<compile_context>
chip_gen: v6e
topology: v6e:2x2x1
jax: 0.10.0
libtpu: 0.0.40
codegen_flags: <defaults>
</compile_context>

<pallas_src>
import functools

import jax
import jax.numpy as jnp
from jax.experimental import pallas as pl
from jax.experimental.pallas import tpu as pltpu


_VMEM_LIMIT = 64 * 1024 * 1024  # explicit scoped-VMEM budget (headroom on v5e)


# ----------------------------------------------------------------------------
# Helpers
# ----------------------------------------------------------------------------
def _pick_tile(dim, target, align):
    """Largest t <= target with dim % t == 0 and t % align == 0, else full dim.

    Every chosen block either equals the full array dim or satisfies the TPU
    (8, 128) tiling rule on that axis.  NOTE: when no aligned divisor exists
    the FULL dimension is used as one block (fine for ViT-sized dims; would be
    a VMEM blow-up only for huge awkward dims).
    """
    if dim <= target:
        return dim
    t = (target // align) * align
    while t >= align:
        if dim % t == 0:
            return t
        t -= align
    return dim


# ----------------------------------------------------------------------------
# Kernel 1: tiled linear  y = x @ W_t + b   (used for both qkv and proj)
# ----------------------------------------------------------------------------
def _linear_kernel(x_ref, w_ref, b_ref, o_ref):
    # Full-K contraction per output tile: no accumulator, no init/finalize.
    o_ref[...] = (jnp.dot(x_ref[...], w_ref[...],
                          preferred_element_type=jnp.float32)
                  + b_ref[...].astype(jnp.float32)).astype(o_ref.dtype)


def _linear_acc_kernel(x_ref, w_ref, b_ref, o_ref, acc_ref):
    # K-tiled variant (only used for very large K).
    @pl.when(pl.program_id(2) == 0)
    def _():
        acc_ref[...] = jnp.zeros_like(acc_ref)

    acc_ref[...] += jnp.dot(x_ref[...], w_ref[...],
                            preferred_element_type=jnp.float32)

    @pl.when(pl.program_id(2) == pl.num_programs(2) - 1)
    def _():
        o_ref[...] = (acc_ref[...] + b_ref[...].astype(jnp.float32)
                      ).astype(o_ref.dtype)


def linear(x2d, w_t, bias, *, tm=512, tn=512, tk=512, max_fused_k=2048):
    """y = x2d @ w_t + bias with a tiled, pipelined Pallas matmul.

    w_t is already [in_features, out_features] (transposed once, outside).
    For ViT-sized K (<= max_fused_k) the whole contraction is done per output
    tile (one long MXU contraction, x streamed once); otherwise a K grid axis
    with an f32 VMEM accumulator is used.
    """
    M, K = x2d.shape
    K2, Nout = w_t.shape
    assert K == K2
    tm = _pick_tile(M, tm, 8)        # sublane axis of x / out
    tn = _pick_tile(Nout, tn, 128)   # lane axis of w / out
    b2d = bias.reshape(1, Nout)

    if K <= max_fused_k:
        return pl.pallas_call(
            _linear_kernel,
            out_shape=jax.ShapeDtypeStruct((M, Nout), x2d.dtype),
            grid=(M // tm, Nout // tn),
            in_specs=[
                pl.BlockSpec((tm, K), lambda i, j: (i, 0)),
                pl.BlockSpec((K, tn), lambda i, j: (0, j)),
                pl.BlockSpec((1, tn), lambda i, j: (0, j)),
            ],
            out_specs=pl.BlockSpec((tm, tn), lambda i, j: (i, j)),
            compiler_params=pltpu.CompilerParams(
                dimension_semantics=("parallel", "parallel"),
                vmem_limit_bytes=_VMEM_LIMIT),
        )(x2d, w_t, b2d)

    tk = _pick_tile(K, tk, 128)
    return pl.pallas_call(
        _linear_acc_kernel,
        out_shape=jax.ShapeDtypeStruct((M, Nout), x2d.dtype),
        grid=(M // tm, Nout // tn, K // tk),
        in_specs=[
            pl.BlockSpec((tm, tk), lambda i, j, k: (i, k)),
            pl.BlockSpec((tk, tn), lambda i, j, k: (k, j)),
            pl.BlockSpec((1, tn), lambda i, j, k: (0, j)),
        ],
        out_specs=pl.BlockSpec((tm, tn), lambda i, j, k: (i, j)),
        scratch_shapes=[pltpu.VMEM((tm, tn), jnp.float32)],
        compiler_params=pltpu.CompilerParams(
            dimension_semantics=("parallel", "parallel", "arbitrary"),
            vmem_limit_bytes=_VMEM_LIMIT),
    )(x2d, w_t, b2d)


# ----------------------------------------------------------------------------
# Kernel 2: attention core
#   attn_h = softmax(q_h @ k_h^T)   (scale already folded into q projection)
#   o[:, :, h*D:(h+1)*D] = attn_h @ v_h
# ----------------------------------------------------------------------------
def _head_attention(q, k, v):
    """Single-head attention on VMEM-resident [N, D] slabs.

    Returns (p_f32 [N, N], o_f32 [N, D]).  Softmax in f32 on VPU/EUP, matmuls
    on the MXU with f32 accumulation in the activation dtype.
    """
    # q @ k^T without materializing a transpose.
    s = jax.lax.dot_general(q, k, (((1,), (1,)), ((), ())),
                            preferred_element_type=jnp.float32)   # [N, N]
    s = s - jnp.max(s, axis=-1, keepdims=True)
    p = jnp.exp(s)
    # Exact reciprocal keeps the softmax bit-close to the reference;
    # pl.reciprocal(..., approx=True) is a free EUP win when tolerable.
    p = p * pl.reciprocal(jnp.sum(p, axis=-1, keepdims=True))
    o_h = jnp.dot(p.astype(v.dtype), v,
                  preferred_element_type=jnp.float32)             # [N, D]
    return p, o_h


def _attn_group_kernel(q_ref, k_ref, v_ref, o_ref, *maybe_attn,
                       heads_per_group, head_dim):
    # Lane-aligned path: one grid step = (batch b, head group g).
    # q_ref/k_ref/v_ref: [1, N, gD] group slabs DMA'd directly via BlockSpec.
    # o_ref: [1, N, gD] lane-dense output slab; attn_ref: [1, hpg, N, N].
    attn_ref = maybe_attn[0] if maybe_attn else None
    qg = q_ref[0]                                  # [N, gD]
    kg = k_ref[0]
    vg = v_ref[0]
    outs = []
    # Short static unroll (hpg is 1-2 for head_dim >= 64): live ranges stay
    # bounded because the head GRID axis, not a Python loop, covers H.
    for hh in range(heads_per_group):
        lo = hh * head_dim
        p, o_h = _head_attention(qg[:, lo:lo + head_dim],
                                 kg[:, lo:lo + head_dim],
                                 vg[:, lo:lo + head_dim])
        if attn_ref is not None:
            attn_ref[0, hh] = p.astype(attn_ref.dtype)
        outs.append(o_h)
    # ONE 128-aligned, lane-dense store for the whole group (no 64-wide
    # masked partial stores).
    o_ref[0] = jnp.concatenate(outs, axis=-1).astype(o_ref.dtype)


def _attn_fullhead_kernel(qkv_ref, o_ref, *maybe_attn, num_heads, head_dim):
    # Fallback path (tiny / lane-unaligned head groups): one grid step per
    # batch element, all heads handled in that step.
    attn_ref = maybe_attn[0] if maybe_attn else None
    C = num_heads * head_dim
    qkv = qkv_ref[0]                               # [N, 3C]
    outs = []
    for h in range(num_heads):
        lo = h * head_dim
        p, o_h = _head_attention(qkv[:, lo:lo + head_dim],
                                 qkv[:, C + lo:C + lo + head_dim],
                                 qkv[:, 2 * C + lo:2 * C + lo + head_dim])
        if attn_ref is not None:
            attn_ref[0, h] = p.astype(attn_ref.dtype)
        outs.append(o_h)
    o_ref[0] = jnp.concatenate(outs, axis=-1).astype(o_ref.dtype)


def attention_core(qkv_bnc, num_heads, head_dim, *, return_attn=True):
    """softmax(q k^T) v on the [B, N, 3C] qkv activations (head-major layout).

    Returns (o [B, N, C] merged-heads lane-dense, attn [B, H, N, N] or None).
    """
    B, N, threeC = qkv_bnc.shape
    C = num_heads * head_dim
    assert threeC == 3 * C
    dt = qkv_bnc.dtype

    # Smallest head group whose lane width is a multiple of 128 (e.g. 2 heads
    # for head_dim=64, 1 head for head_dim>=128).  None -> fallback path.
    hpg = next((c for c in range(1, num_heads + 1)
                if num_heads % c == 0 and (c * head_dim) % 128 == 0), None)

    if hpg is not None:
        gD = hpg * head_dim
        num_groups = num_heads // hpg
        k_base = C // gD                       # block offset of the k section
        kernel = functools.partial(_attn_group_kernel,
                                   heads_per_group=hpg, head_dim=head_dim)
        # qkv stays in its natural [B, N, 3C] HBM layout; the three in_specs
        # just DMA the disjoint q / k / v group slabs (lane-aligned).
        in_specs = [
            pl.BlockSpec((1, N, gD), lambda b, g: (b, 0, g)),
            pl.BlockSpec((1, N, gD), lambda b, g: (b, 0, k_base + g)),
            pl.BlockSpec((1, N, gD), lambda b, g: (b, 0, 2 * k_base + g)),
        ]
        out_shapes = [jax.ShapeDtypeStruct((B, N, C), dt)]
        out_specs = [pl.BlockSpec((1, N, gD), lambda b, g: (b, 0, g))]
        if return_attn:
            out_shapes.append(jax.ShapeDtypeStruct((B, num_heads, N, N), dt))
            out_specs.append(
                pl.BlockSpec((1, hpg, N, N), lambda b, g: (b, g, 0, 0)))
        grid = (B, num_groups)
        semantics = ("parallel", "parallel")   # keeps both v7x TCs busy @ B=1
        args = (qkv_bnc, qkv_bnc, qkv_bnc)
    else:
        kernel = functools.partial(_attn_fullhead_kernel,
                                   num_heads=num_heads, head_dim=head_dim)
        in_specs = [pl.BlockSpec((1, N, threeC), lambda b: (b, 0, 0))]
        out_shapes = [jax.ShapeDtypeStruct((B, N, C), dt)]
        out_specs = [pl.BlockSpec((1, N, C), lambda b: (b, 0, 0))]
        if return_attn:
            out_shapes.append(jax.ShapeDtypeStruct((B, num_heads, N, N), dt))
            out_specs.append(
                pl.BlockSpec((1, num_heads, N, N), lambda b: (b, 0, 0, 0)))
        grid = (B,)
        semantics = ("parallel",)
        args = (qkv_bnc,)

    outs = pl.pallas_call(
        kernel,
        out_shape=tuple(out_shapes),
        grid=grid,
        in_specs=in_specs,
        out_specs=tuple(out_specs),
        compiler_params=pltpu.CompilerParams(
            dimension_semantics=semantics,
            vmem_limit_bytes=_VMEM_LIMIT),
    )(*args)

    if return_attn:
        o, attn = outs
        return o, attn
    (o,) = outs
    return o, None


# ----------------------------------------------------------------------------
# Parameter prep (one-time) + QuantAttention forward
# ----------------------------------------------------------------------------
def prepare_params(torch_params, num_heads):
    """One-time prep: transpose nn.Linear weights [out,in] -> [in,out] and
    fold the softmax scale (head_dim**-0.5) into the q projection."""
    w_qkv_t = jnp.asarray(torch_params["w_qkv"]).T          # [C, 3C]
    b_qkv = jnp.asarray(torch_params["b_qkv"])               # [3C]
    C = w_qkv_t.shape[0]
    scale = float(C // num_heads) ** -0.5
    w_qkv_t = w_qkv_t.at[:, :C].multiply(scale)
    b_qkv = b_qkv.at[:C].multiply(scale)
    return {
        "w_qkv_t": w_qkv_t,
        "b_qkv": b_qkv,
        "w_proj_t": jnp.asarray(torch_params["w_proj"]).T,
        "b_proj": jnp.asarray(torch_params["b_proj"]),
    }


def quant_attention_forward(x, params, num_heads, *, return_attn=True):
    """QuantAttention.forward (quantizers disabled, dropouts identity).

    Returns (out [B,N,C], attn [B,H,N,N]) like the PyTorch module; pass
    return_attn=False to skip the B*H*N^2 attention-matrix HBM writeback when
    the caller does not need it (attn is then None).
    """
    B, N, C = x.shape
    D = C // num_heads

    # qkv projection: [B*N, C] @ [C, 3C] + [3C]   (scale pre-folded into q)
    qkv = linear(x.reshape(B * N, C), params["w_qkv_t"], params["b_qkv"])
    qkv = qkv.reshape(B, N, 3 * C)   # free view -- no HBM transpose of qkv

    # attention core: o comes out already merged-heads [B, N, C] (lane-dense)
    o, attn = attention_core(qkv, num_heads, D, return_attn=return_attn)

    # output projection
    out = linear(o.reshape(B * N, C), params["w_proj_t"], params["b_proj"])
    return out.reshape(B, N, C), attn


# ----------------------------------------------------------------------------
# Pure-JAX reference for verification
# ----------------------------------------------------------------------------
def reference_forward(x, torch_params, num_heads):
    B, N, C = x.shape
    D = C // num_heads
    scale = float(D) ** -0.5
    qkv = x @ torch_params["w_qkv"].T + torch_params["b_qkv"]
    qkv = qkv.reshape(B, N, 3, num_heads, D).transpose(2, 0, 3, 1, 4)
    q, k, v = qkv[0], qkv[1], qkv[2]
    s = jnp.einsum("bhnd,bhmd->bhnm", q, k) * scale
    attn = jax.nn.softmax(s, axis=-1)
    o = jnp.einsum("bhnm,bhmd->bhnd", attn, v)
    o = o.transpose(0, 2, 1, 3).reshape(B, N, C)
    out = o @ torch_params["w_proj"].T + torch_params["b_proj"]
    return out, attn


if __name__ == "__main__":
    def run_case(B, N, C, H, key):
        kx, kwq, kbq, kwp, kbp = jax.random.split(key, 5)
        x = jax.random.normal(kx, (B, N, C), dtype=jnp.float32)
        torch_params = {
            # PyTorch nn.Linear weight layout: [out_features, in_features]
            "w_qkv": jax.random.normal(kwq, (3 * C, C), jnp.float32) * 0.05,
            "b_qkv": jax.random.normal(kbq, (3 * C,), jnp.float32) * 0.05,
            "w_proj": jax.random.normal(kwp, (C, C), jnp.float32) * 0.05,
            "b_proj": jax.random.normal(kbp, (C,), jnp.float32) * 0.05,
        }
        params = prepare_params(torch_params, H)   # one-time weight prep
        fwd = jax.jit(functools.partial(quant_attention_forward, num_heads=H))
        out, attn = fwd(x, params)
        out = jax.block_until_ready(out)
        attn = jax.block_until_ready(attn)

        ref_out, ref_attn = reference_forward(x, torch_params, H)
        assert out.shape == (B, N, C) and attn.shape == (B, H, N, N)
        assert jnp.allclose(out, ref_out, atol=1e-4, rtol=1e-4)
        assert jnp.allclose(attn, ref_attn, atol=1e-5, rtol=1e-4)
        return x, params

    key = jax.random.PRNGKey(0)
    k1, k2 = jax.random.split(key)

    # Case 1: tiny shapes from the module spec (exercises the fallback path).
    x1, params1 = run_case(B=2, N=8, C=32, H=4, key=k1)

    # Optional-attn fast path: skips the (B, H, N, N) HBM writeback entirely.
    fwd_no_attn = jax.jit(functools.partial(
        quant_attention_forward, num_heads=4, return_attn=False))
    out_na, attn_na = fwd_no_attn(x1, params1)
    out_na = jax.block_until_ready(out_na)
    assert attn_na is None

    # Case 2: lane-aligned shapes (exercises the head-group grid path, D=64,
    # two heads per 128-lane group, grid=(B, head_groups)).
    run_case(B=2, N=128, C=256, H=4, key=k2)

    print("KERNEL_OK")
</pallas_src>

<mosaic_0001>
module attributes {stable_mosaic.version = 11 : i64} {
  func.func @_linear_kernel(%arg0: i32, %arg1: i32, %arg2: memref<16x32xf32, #tpu.memory_space<vmem>>, %arg3: memref<32x32xf32, #tpu.memory_space<vmem>>, %arg4: memref<1x32xf32, #tpu.memory_space<vmem>>, %arg5: memref<16x32xf32, #tpu.memory_space<vmem>>) attributes {dimension_semantics = [#tpu.dimension_semantics<parallel>, #tpu.dimension_semantics<parallel>], iteration_bounds = array<i64: 1, 1>, scalar_prefetch = 0 : i64, scratch_operands = 0 : i64, tpu.core_type = #tpu.core_type<tc>, window_params = [{transform_indices = @transform_0, window_bounds = array<i64: 16, 32>}, {transform_indices = @transform_1, window_bounds = array<i64: 32, 32>}, {transform_indices = @transform_2, window_bounds = array<i64: 1, 32>}, {transform_indices = @transform_3, window_bounds = array<i64: 16, 32>}]} {
    %c0 = arith.constant 0 : index
    %c0_0 = arith.constant 0 : index
    %0 = vector.load %arg2[%c0, %c0_0] : memref<16x32xf32, #tpu.memory_space<vmem>>, vector<16x32xf32>
    %c0_1 = arith.constant 0 : index
    %c0_2 = arith.constant 0 : index
    %1 = vector.load %arg3[%c0_1, %c0_2] : memref<32x32xf32, #tpu.memory_space<vmem>>, vector<32x32xf32>
    %cst = arith.constant dense<0.000000e+00> : vector<16x32xf32>
    %2 = tpu.matmul %0, %1, %cst {dimension_numbers = #tpu.dot_dimension_numbers<[1], [0], [0], [1], [0, 0, 1, 1], [], []>} : vector<16x32xf32>, vector<32x32xf32>, vector<16x32xf32> -> vector<16x32xf32>
    %c0_3 = arith.constant 0 : index
    %c0_4 = arith.constant 0 : index
    %3 = vector.load %arg4[%c0_3, %c0_4] : memref<1x32xf32, #tpu.memory_space<vmem>>, vector<1x32xf32>
    %4 = vector.broadcast %3 : vector<1x32xf32> to vector<16x32xf32>
    %5 = arith.addf %2, %4 : vector<16x32xf32>
    %c0_5 = arith.constant 0 : index
    %c0_6 = arith.constant 0 : index
    %6 = vector.load %arg5[%c0_5, %c0_6] : memref<16x32xf32, #tpu.memory_space<vmem>>, vector<16x32xf32>
    tpu.vector_store %arg5[%c0_5, %c0_6], %5 {strides = array<i32>} : memref<16x32xf32, #tpu.memory_space<vmem>>, vector<16x32xf32>,
    return
  }
  func.func @transform_0(%arg0: i32, %arg1: i32) -> (i32, i32) {
    %c0_i32 = arith.constant 0 : i32
    %c0_i32_0 = arith.constant 0 : i32
    return %arg0, %c0_i32 : i32, i32
  }
  func.func @transform_1(%arg0: i32, %arg1: i32) -> (i32, i32) {
    %c0_i32 = arith.constant 0 : i32
    %c0_i32_0 = arith.constant 0 : i32
    return %c0_i32, %arg1 : i32, i32
  }
  func.func @transform_2(%arg0: i32, %arg1: i32) -> (i32, i32) {
    %c0_i32 = arith.constant 0 : i32
    %c0_i32_0 = arith.constant 0 : i32
    return %c0_i32, %arg1 : i32, i32
  }
  func.func @transform_3(%arg0: i32, %arg1: i32) -> (i32, i32) {
    %c0_i32 = arith.constant 0 : i32
    return %arg0, %arg1 : i32, i32
  }
}

module attributes {stable_mosaic.version = 11 : i64} {
  func.func @_linear_kernel(%arg0: i32, %arg1: i32, %arg2: memref<16x32xf32, #tpu.memory_space<vmem>>, %arg3: memref<32x96xf32, #tpu.memory_space<vmem>>, %arg4: memref<1x96xf32, #tpu.memory_space<vmem>>, %arg5: memref<16x96xf32, #tpu.memory_space<vmem>>) attributes {dimension_semantics = [#tpu.dimension_semantics<parallel>, #tpu.dimension_semantics<parallel>], iteration_bounds = array<i64: 1, 1>, scalar_prefetch = 0 : i64, scratch_operands = 0 : i64, tpu.core_type = #tpu.core_type<tc>, window_params = [{transform_indices = @transform_0, window_bounds = array<i64: 16, 32>}, {transform_indices = @transform_1, window_bounds = array<i64: 32, 96>}, {transform_indices = @transform_2, window_bounds = array<i64: 1, 96>}, {transform_indices = @transform_3, window_bounds = array<i64: 16, 96>}]} {
    %c0 = arith.constant 0 : index
    %c0_0 = arith.constant 0 : index
    %0 = vector.load %arg2[%c0, %c0_0] : memref<16x32xf32, #tpu.memory_space<vmem>>, vector<16x32xf32>
    %c0_1 = arith.constant 0 : index
    %c0_2 = arith.constant 0 : index
    %1 = vector.load %arg3[%c0_1, %c0_2] : memref<32x96xf32, #tpu.memory_space<vmem>>, vector<32x96xf32>
    %cst = arith.constant dense<0.000000e+00> : vector<16x96xf32>
    %2 = tpu.matmul %0, %1, %cst {dimension_numbers = #tpu.dot_dimension_numbers<[1], [0], [0], [1], [0, 0, 1, 1], [], []>} : vector<16x32xf32>, vector<32x96xf32>, vector<16x96xf32> -> vector<16x96xf32>
    %c0_3 = arith.constant 0 : index
    %c0_4 = arith.constant 0 : index
    %3 = vector.load %arg4[%c0_3, %c0_4] : memref<1x96xf32, #tpu.memory_space<vmem>>, vector<1x96xf32>
    %4 = vector.broadcast %3 : vector<1x96xf32> to vector<16x96xf32>
    %5 = arith.addf %2, %4 : vector<16x96xf32>
    %c0_5 = arith.constant 0 : index
    %c0_6 = arith.constant 0 : index
    %6 = vector.load %arg5[%c0_5, %c0_6] : memref<16x96xf32, #tpu.memory_space<vmem>>, vector<16x96xf32>
    tpu.vector_store %arg5[%c0_5, %c0_6], %5 {strides = array<i32>} : memref<16x96xf32, #tpu.memory_space<vmem>>, vector<16x96xf32>,
    return
  }
  func.func @transform_0(%arg0: i32, %arg1: i32) -> (i32, i32) {
    %c0_i32 = arith.constant 0 : i32
    %c0_i32_0 = arith.constant 0 : i32
    return %arg0, %c0_i32 : i32, i32
  }
  func.func @transform_1(%arg0: i32, %arg1: i32) -> (i32, i32) {
    %c0_i32 = arith.constant 0 : i32
    %c0_i32_0 = arith.constant 0 : i32
    return %c0_i32, %arg1 : i32, i32
  }
  func.func @transform_2(%arg0: i32, %arg1: i32) -> (i32, i32) {
    %c0_i32 = arith.constant 0 : i32
    %c0_i32_0 = arith.constant 0 : i32
    return %c0_i32, %arg1 : i32, i32
  }
  func.func @transform_3(%arg0: i32, %arg1: i32) -> (i32, i32) {
    %c0_i32 = arith.constant 0 : i32
    return %arg0, %arg1 : i32, i32
  }
}

module attributes {stable_mosaic.version = 11 : i64} {
  func.func @_attn_fullhead_kernel(%arg0: i32, %arg1: memref<1x8x96xf32, #tpu.memory_space<vmem>>, %arg2: memref<1x8x32xf32, #tpu.memory_space<vmem>>, %arg3: memref<1x4x8x8xf32, #tpu.memory_space<vmem>>) attributes {dimension_semantics = [#tpu.dimension_semantics<parallel>], iteration_bounds = array<i64: 2>, scalar_prefetch = 0 : i64, scratch_operands = 0 : i64, tpu.core_type = #tpu.core_type<tc>, window_params = [{transform_indices = @transform_0, window_bounds = array<i64: 1, 8, 96>}, {transform_indices = @transform_1, window_bounds = array<i64: 1, 8, 32>}, {transform_indices = @transform_2, window_bounds = array<i64: 1, 4, 8, 8>}]} {
    %c0 = arith.constant 0 : index
    %c0_0 = arith.constant 0 : index
    %c0_1 = arith.constant 0 : index
    %0 = vector.load %arg1[%c0, %c0_0, %c0_1] : memref<1x8x96xf32, #tpu.memory_space<vmem>>, vector<1x8x96xf32>
    %1 = vector.shape_cast %0 : vector<1x8x96xf32> to vector<8x96xf32>
    %2 = vector.extract_strided_slice %1 {offsets = [0, 0], sizes = [8, 8], strides = [1, 1]} : vector<8x96xf32> to vector<8x8xf32>
    %3 = vector.extract_strided_slice %1 {offsets = [0, 32], sizes = [8, 8], strides = [1, 1]} : vector<8x96xf32> to vector<8x8xf32>
    %4 = vector.extract_strided_slice %1 {offsets = [0, 64], sizes = [8, 8], strides = [1, 1]} : vector<8x96xf32> to vector<8x8xf32>
    %cst = arith.constant dense<0.000000e+00> : vector<8x8xf32>
    %5 = tpu.matmul %2, %3, %cst {dimension_numbers = #tpu.dot_dimension_numbers<[1], [1], [0], [0], [0, 0, 1, 0], [], []>} : vector<8x8xf32>, vector<8x8xf32>, vector<8x8xf32> -> vector<8x8xf32>
    %cst_2 = arith.constant dense<0xFF800000> : vector<8xf32>
    %6 = vector.multi_reduction <maximumf>, %5, %cst_2 [1] : vector<8x8xf32> to vector<8xf32>
    %7 = vector.shape_cast %6 : vector<8xf32> to vector<8x1xf32>
    %8 = vector.broadcast %7 : vector<8x1xf32> to vector<8x8xf32>
    %9 = arith.subf %5, %8 : vector<8x8xf32>
    %10 = math.exp %9 : vector<8x8xf32>
    %cst_3 = arith.constant dense<0.000000e+00> : vector<8xf32>
    %11 = vector.multi_reduction <add>, %10, %cst_3 [1] : vector<8x8xf32> to vector<8xf32>
    %12 = vector.shape_cast %11 : vector<8xf32> to vector<8x1xf32>
    %13 = tpu.reciprocal %12 : vector<8x1xf32> -> vector<8x1xf32>
    %14 = vector.broadcast %13 : vector<8x1xf32> to vector<8x8xf32>
    %15 = arith.mulf %10, %14 : vector<8x8xf32>
    %cst_4 = arith.constant dense<0.000000e+00> : vector<8x8xf32>
    %16 = tpu.matmul %15, %4, %cst_4 {dimension_numbers = #tpu.dot_dimension_numbers<[1], [0], [0], [1], [0, 0, 1, 1], [], []>} : vector<8x8xf32>, vector<8x8xf32>, vector<8x8xf32> -> vector<8x8xf32>
    %c0_5 = arith.constant 0 : index
    %c0_6 = arith.constant 0 : index
    %c0_7 = arith.constant 0 : index
    %c0_8 = arith.constant 0 : index
    %17 = vector.load %arg3[%c0_5, %c0_6, %c0_7, %c0_8] : memref<1x4x8x8xf32, #tpu.memory_space<vmem>>, vector<1x1x8x8xf32>
    %18 = vector.shape_cast %17 : vector<1x1x8x8xf32> to vector<8x8xf32>
    %19 = vector.shape_cast %15 : vector<8x8xf32> to vector<1x1x8x8xf32>
    tpu.vector_store %arg3[%c0_5, %c0_6, %c0_7, %c0_8], %19 {strides = array<i32>} : memref<1x4x8x8xf32, #tpu.memory_space<vmem>>, vector<1x1x8x8xf32>,
    %20 = vector.extract_strided_slice %1 {offsets = [0, 8], sizes = [8, 8], strides = [1, 1]} : vector<8x96xf32> to vector<8x8xf32>
    %21 = vector.extract_strided_slice %1 {offsets = [0, 40], sizes = [8, 8], strides = [1, 1]} : vector<8x96xf32> to vector<8x8xf32>
    %22 = vector.extract_strided_slice %1 {offsets = [0, 72], sizes = [8, 8], strides = [1, 1]} : vector<8x96xf32> to vector<8x8xf32>
    %cst_9 = arith.constant dense<0.000000e+00> : vector<8x8xf32>
    %23 = tpu.matmul %20, %21, %cst_9 {dimension_numbers = #tpu.dot_dimension_numbers<[1], [1], [0], [0], [0, 0, 1, 0], [], []>} : vector<8x8xf32>, vector<8x8xf32>, vector<8x8xf32> -> vector<8x8xf32>
    %cst_10 = arith.constant dense<0xFF800000> : vector<8xf32>
    %24 = vector.multi_reduction <maximumf>, %23, %cst_10 [1] : vector<8x8xf32> to vector<8xf32>
    %25 = vector.shape_cast %24 : vector<8xf32> to vector<8x1xf32>
    %26 = vector.broadcast %25 : vector<8x1xf32> to vector<8x8xf32>
    %27 = arith.subf %23, %26 : vector<8x8xf32>
    %28 = math.exp %27 : vector<8x8xf32>
    %cst_11 = arith.constant dense<0.000000e+00> : vector<8xf32>
    %29 = vector.multi_reduction <add>, %28, %cst_11 [1] : vector<8x8xf32> to vector<8xf32>
    %30 = vector.shape_cast %29 : vector<8xf32> to vector<8x1xf32>
    %31 = tpu.reciprocal %30 : vector<8x1xf32> -> vector<8x1xf32>
    %32 = vector.broadcast %31 : vector<8x1xf32> to vector<8x8xf32>
    %33 = arith.mulf %28, %32 : vector<8x8xf32>
    %cst_12 = arith.constant dense<0.000000e+00> : vector<8x8xf32>
    %34 = tpu.matmul %33, %22, %cst_12 {dimension_numbers = #tpu.dot_dimension_numbers<[1], [0], [0], [1], [0, 0, 1, 1], [], []>} : vector<8x8xf32>, vector<8x8xf32>, vector<8x8xf32> -> vector<8x8xf32>
    %c0_13 = arith.constant 0 : index
    %c1 = arith.constant 1 : index
    %c0_14 = arith.constant 0 : index
    %c0_15 = arith.constant 0 : index
    %35 = vector.load %arg3[%c0_13, %c1, %c0_14, %c0_15] : memref<1x4x8x8xf32, #tpu.memory_space<vmem>>, vector<1x1x8x8xf32>
    %36 = vector.shape_cast %35 : vector<1x1x8x8xf32> to vector<8x8xf32>
    %37 = vector.shape_cast %33 : vector<8x8xf32> to vector<1x1x8x8xf32>
    tpu.vector_store %arg3[%c0_13, %c1, %c0_14, %c0_15], %37 {strides = array<i32>} : memref<1x4x8x8xf32, #tpu.memory_space<vmem>>, vector<1x1x8x8xf32>,
    %38 = vector.extract_strided_slice %1 {offsets = [0, 16], sizes = [8, 8], strides = [1, 1]} : vector<8x96xf32> to vector<8x8xf32>
    %39 = vector.extract_strided_slice %1 {offsets = [0, 48], sizes = [8, 8], strides = [1, 1]} : vector<8x96xf32> to vector<8x8xf32>
    %40 = vector.extract_strided_slice %1 {offsets = [0, 80], sizes = [8, 8], strides = [1, 1]} : vector<8x96xf32> to vector<8x8xf32>
    %cst_16 = arith.constant dense<0.000000e+00> : vector<8x8xf32>
    %41 = tpu.matmul %38, %39, %cst_16 {dimension_numbers = #tpu.dot_dimension_numbers<[1], [1], [0], [0], [0, 0, 1, 0], [], []>} : vector<8x8xf32>, vector<8x8xf32>, vector<8x8xf32> -> vector<8x8xf32>
    %cst_17 = arith.constant dense<0xFF800000> : vector<8xf32>
    %42 = vector.multi_reduction <maximumf>, %41, %cst_17 [1] : vector<8x8xf32> to vector<8xf32>
    %43 = vector.shape_cast %42 : vector<8xf32> to vector<8x1xf32>
    %44 = vector.broadcast %43 : vector<8x1xf32> to vector<8x8xf32>
    %45 = arith.subf %41, %44 : vector<8x8xf32>
    %46 = math.exp %45 : vector<8x8xf32>
    %cst_18 = arith.constant dense<0.000000e+00> : vector<8xf32>
    %47 = vector.multi_reduction <add>, %46, %cst_18 [1] : vector<8x8xf32> to vector<8xf32>
    %48 = vector.shape_cast %47 : vector<8xf32> to vector<8x1xf32>
    %49 = tpu.reciprocal %48 : vector<8x1xf32> -> vector<8x1xf32>
    %50 = vector.broadcast %49 : vector<8x1xf32> to vector<8x8xf32>
    %51 = arith.mulf %46, %50 : vector<8x8xf32>
    %cst_19 = arith.constant dense<0.000000e+00> : vector<8x8xf32>
    %52 = tpu.matmul %51, %40, %cst_19 {dimension_numbers = #tpu.dot_dimension_numbers<[1], [0], [0], [1], [0, 0, 1, 1], [], []>} : vector<8x8xf32>, vector<8x8xf32>, vector<8x8xf32> -> vector<8x8xf32>
    %c0_20 = arith.constant 0 : index
    %c2 = arith.constant 2 : index
    %c0_21 = arith.constant 0 : index
    %c0_22 = arith.constant 0 : index
    %53 = vector.load %arg3[%c0_20, %c2, %c0_21, %c0_22] : memref<1x4x8x8xf32, #tpu.memory_space<vmem>>, vector<1x1x8x8xf32>
    %54 = vector.shape_cast %53 : vector<1x1x8x8xf32> to vector<8x8xf32>
    %55 = vector.shape_cast %51 : vector<8x8xf32> to vector<1x1x8x8xf32>
    tpu.vector_store %arg3[%c0_20, %c2, %c0_21, %c0_22], %55 {strides = array<i32>} : memref<1x4x8x8xf32, #tpu.memory_space<vmem>>, vector<1x1x8x8xf32>,
    %56 = vector.extract_strided_slice %1 {offsets = [0, 24], sizes = [8, 8], strides = [1, 1]} : vector<8x96xf32> to vector<8x8xf32>
    %57 = vector.extract_strided_slice %1 {offsets = [0, 56], sizes = [8, 8], strides = [1, 1]} : vector<8x96xf32> to vector<8x8xf32>
    %58 = vector.extract_strided_slice %1 {offsets = [0, 88], sizes = [8, 8], strides = [1, 1]} : vector<8x96xf32> to vector<8x8xf32>
    %cst_23 = arith.constant dense<0.000000e+00> : vector<8x8xf32>
    %59 = tpu.matmul %56, %57, %cst_23 {dimension_numbers = #tpu.dot_dimension_numbers<[1], [1], [0], [0], [0, 0, 1, 0], [], []>} : vector<8x8xf32>, vector<8x8xf32>, vector<8x8xf32> -> vector<8x8xf32>
    %cst_24 = arith.constant dense<0xFF800000> : vector<8xf32>
    %60 = vector.multi_reduction <maximumf>, %59, %cst_24 [1] : vector<8x8xf32> to vector<8xf32>
    %61 = vector.shape_cast %60 : vector<8xf32> to vector<8x1xf32>
    %62 = vector.broadcast %61 : vector<8x1xf32> to vector<8x8xf32>
    %63 = arith.subf %59, %62 : vector<8x8xf32>
    %64 = math.exp %63 : vector<8x8xf32>
    %cst_25 = arith.constant dense<0.000000e+00> : vector<8xf32>
    %65 = vector.multi_reduction <add>, %64, %cst_25 [1] : vector<8x8xf32> to vector<8xf32>
    %66 = vector.shape_cast %65 : vector<8xf32> to vector<8x1xf32>
    %67 = tpu.reciprocal %66 : vector<8x1xf32> -> vector<8x1xf32>
    %68 = vector.broadcast %67 : vector<8x1xf32> to vector<8x8xf32>
    %69 = arith.mulf %64, %68 : vector<8x8xf32>
    %cst_26 = arith.constant dense<0.000000e+00> : vector<8x8xf32>
    %70 = tpu.matmul %69, %58, %cst_26 {dimension_numbers = #tpu.dot_dimension_numbers<[1], [0], [0], [1], [0, 0, 1, 1], [], []>} : vector<8x8xf32>, vector<8x8xf32>, vector<8x8xf32> -> vector<8x8xf32>
    %c0_27 = arith.constant 0 : index
    %c3 = arith.constant 3 : index
    %c0_28 = arith.constant 0 : index
    %c0_29 = arith.constant 0 : index
    %71 = vector.load %arg3[%c0_27, %c3, %c0_28, %c0_29] : memref<1x4x8x8xf32, #tpu.memory_space<vmem>>, vector<1x1x8x8xf32>
    %72 = vector.shape_cast %71 : vector<1x1x8x8xf32> to vector<8x8xf32>
    %73 = vector.shape_cast %69 : vector<8x8xf32> to vector<1x1x8x8xf32>
    tpu.vector_store %arg3[%c0_27, %c3, %c0_28, %c0_29], %73 {strides = array<i32>} : memref<1x4x8x8xf32, #tpu.memory_space<vmem>>, vector<1x1x8x8xf32>,
    %74 = tpu.concatenate %16, %34, %52, %70 in 1 : vector<8x8xf32>, vector<8x8xf32>, vector<8x8xf32>, vector<8x8xf32> -> vector<8x32xf32>
    %c0_30 = arith.constant 0 : index
    %c0_31 = arith.constant 0 : index
    %c0_32 = arith.constant 0 : index
    %75 = vector.load %arg2[%c0_30, %c0_31, %c0_32] : memref<1x8x32xf32, #tpu.memory_space<vmem>>, vector<1x8x32xf32>
    %76 = vector.shape_cast %75 : vector<1x8x32xf32> to vector<8x32xf32>
    %77 = vector.shape_cast %74 : vector<8x32xf32> to vector<1x8x32xf32>
    tpu.vector_store %arg2[%c0_30, %c0_31, %c0_32], %77 {strides = array<i32>} : memref<1x8x32xf32, #tpu.memory_space<vmem>>, vector<1x8x32xf32>,
    return
  }
  func.func @transform_0(%arg0: i32) -> (i32, i32, i32) {
    %c0_i32 = arith.constant 0 : i32
    %c0_i32_0 = arith.constant 0 : i32
    %c0_i32_1 = arith.constant 0 : i32
    return %arg0, %c0_i32, %c0_i32_0 : i32, i32, i32
  }
  func.func @transform_1(%arg0: i32) -> (i32, i32, i32) {
    %c0_i32 = arith.constant 0 : i32
    %c0_i32_0 = arith.constant 0 : i32
    %c0_i32_1 = arith.constant 0 : i32
    return %arg0, %c0_i32, %c0_i32_0 : i32, i32, i32
  }
  func.func @transform_2(%arg0: i32) -> (i32, i32, i32, i32) {
    %c0_i32 = arith.constant 0 : i32
    %c0_i32_0 = arith.constant 0 : i32
    %c0_i32_1 = arith.constant 0 : i32
    %c0_i32_2 = arith.constant 0 : i32
    return %arg0, %c0_i32, %c0_i32_0, %c0_i32_1 : i32, i32, i32, i32
  }
}

</mosaic_0001>

<llo_original>
// kernel: quant_attention_forward.3
$region0: #{quant_attention_forward.3}
  #allocation0 [shape = 'u32[]', space=smem, size = 0x4, offset = 0x4, fixed_abs, tag = 'smem constant byte address 0x4 - core index']
  #allocation1 [shape = 'u32[144,128]{1,0:T(1,128)}', space=vmem, size = 0x12000, scoped, tag = 'internal scratch']
  %s0 = inlined_call_operand.hbm [shape: f32[16,32], index: 0, kind: input, shape index: {}]
  %s1 = inlined_call_operand.hbm [shape: f32[32,96], index: 1, kind: input, shape index: {}]
  %s2 = inlined_call_operand.vmem [shape: f32[1,96], index: 2, kind: input, shape index: {}]
  %s3 = inlined_call_operand.vmem [shape: f32[16,96], index: 3, kind: output, shape index: {}]
  %s4 = sld [smem:[#allocation0]]
  $region30: #{quant_attention_forward.3} parent=0
    _
  %s6 = ssub.s32 1, %s4
  %s7 = scalar_select 0, %s6, %s4
  $region1: #{quant_attention_forward.3} parent=0
    #allocation2 [shape = 'u8[8192]{0}', space=vmem, size = 0x2000, scoped, tag = 'input window, operand 0, single buffered']
    #allocation3 [shape = 's32[1]{0}', space=sflag, size = 0x4, scoped, tag = 'scoped memory for quant_attention_forward.3']
    #allocation4 [shape = 'u8[16384]{0}', space=vmem, size = 0x4000, scoped, tag = 'input window, operand 1, single buffered']
    #allocation5 [shape = 's32[1]{0}', space=sflag, size = 0x4, scoped, tag = 'scoped memory for quant_attention_forward.3']
    %8 = vsyncpa [#allocation3], 0
    %9 = vsyncpa [#allocation5], 0
    // Predicated region
    $region2: #{quant_attention_forward.3} parent=1 // pred_check
      _
    $region3: #{quant_attention_forward.3} parent=1 // pred_check_branch
      %11 = sbr.rel (0) target = $region5
    $region4: #{quant_attention_forward.3} parent=1 // pred_region
      %s13 = ssub.s32 256, 256
      %14 = vsyncadd [#allocation3], %s13
      %s15 = sshll.u32 [#allocation2], 4
      %s16 = int_to_ptr.vmem [resolvable:$true] %s15
      %21 = dma.hbm_to_vmem [thread:$0]  %s0, 256, %s16, [#allocation3], 128, 128, 8
    $region5: #{quant_attention_forward.3} parent=1 // pred_fallthru
      _
    // Predicated region
    $region6: #{quant_attention_forward.3} parent=1 // pred_check
      _
    $region7: #{quant_attention_forward.3} parent=1 // pred_check_branch
      %23 = sbr.rel (0) target = $region9
    $region8: #{quant_attention_forward.3} parent=1 // pred_region
      %s25 = ssub.s32 512, 512
      %26 = vsyncadd [#allocation5], %s25
      %s27 = sshll.u32 [#allocation4], 4
      %s28 = int_to_ptr.vmem [resolvable:$true] %s27
      %33 = dma.hbm_to_vmem [thread:$0]  %s1, 512, %s28, [#allocation5], 128, 128, 8
    $region9: #{quant_attention_forward.3} parent=1 // pred_fallthru
      _
    // Predicated region
    $region10: #{quant_attention_forward.3} parent=1 // pred_check
      _
    $region11: #{quant_attention_forward.3} parent=1 // pred_check_branch
      %35 = sbr.rel (0) target = $region13
    $region12: #{quant_attention_forward.3} parent=1 // pred_region
      _
    $region13: #{quant_attention_forward.3} parent=1 // pred_fallthru
      _
    // Predicated region
    $region14: #{quant_attention_forward.3} parent=1 // pred_check
      _
    $region15: #{quant_attention_forward.3} parent=1 // pred_check_branch
      %37 = sbr.rel (0) target = $region17
    $region16: #{quant_attention_forward.3} parent=1 // pred_region
      %38 = dma.done [#allocation3], 256
    $region17: #{quant_attention_forward.3} parent=1 // pred_fallthru
      _
    // Predicated region
    $region18: #{quant_attention_forward.3} parent=1 // pred_check
      _
    $region19: #{quant_attention_forward.3} parent=1 // pred_check_branch
      %40 = sbr.rel (0) target = $region21
    $region20: #{quant_attention_forward.3} parent=1 // pred_region
      %41 = dma.done [#allocation5], 512
    $region21: #{quant_attention_forward.3} parent=1 // pred_fallthru
      _
    %v42 = vld [vmem:[#allocation2] sm:$0xff]
    %v43 = vld [vmem:[#allocation2 + $0x8] sm:$0xff]
    %v44 = vld [vmem:[#allocation4] sm:$0xff]
    %v45 = vld [vmem:[#allocation4 + $0x8] sm:$0xff]
    %v46 = vld [vmem:[#allocation4 + $0x10] sm:$0xff]
    %v47 = vld [vmem:[#allocation4 + $0x18] sm:$0xff]
    %v48 = vld [vmem:[%s2] sm:$0x1]
    %v50 = vlaneseq
    %v51 = vshrl.u32 %v50, 7
    %v52 = vsub.s32 0, %v51
    %v53 = vrot.slane %v48, %v52
    %vm55 = vcmask 261120
    %v57 = vsel %vm55, %v42, 0
    %v60 = vsel %vm55, %v43, 0
    %62 = vmatprep.subr.mxu0 0.0
    %63 = vmatpush1.msra.mxu0 0.0
    %64 = vmatprep.subr.mxu0 0.0
    %65 = vmatpush1.msra.mxu0 0.0
    %66 = vmatprep.subr.mxu0 0.0
    %67 = vmatpush1.msra.mxu0 0.0
    %68 = vmatprep.subr.mxu0 0.0
    %69 = vmatpush1.msra.mxu0 0.0
    %70 = vmatprep.subr.mxu0 0.0
    %71 = vmatpush1.msra.mxu0 0.0
    %72 = vmatprep.subr.mxu0 0.0
    %73 = vmatpush1.msra.mxu0 0.0
    %74 = vmatprep.subr.mxu0 0.0
    %75 = vmatpush1.msra.mxu0 0.0
    %76 = vmatprep.subr.mxu0 0.0
    %77 = vmatpush1.msra.mxu0 0.0
    %78 = vmatprep.subr.mxu0 0.0
    %79 = vmatpush1.msra.mxu0 0.0
    %80 = vmatprep.subr.mxu0 0.0
    %81 = vmatpush1.msra.mxu0 0.0
    %82 = vmatprep.subr.mxu0 0.0
    %83 = vmatpush1.msra.mxu0 0.0
    %84 = vmatprep.subr.mxu0 0.0
    %85 = vmatpush1.msra.mxu0 0.0
    %86 = vmatprep.subr.mxu0 0.0
    %87 = vmatpush1.msra.mxu0 %v47
    %88 = vmatprep.subr.mxu0 0.0
    %89 = vmatpush1.msra.mxu0 %v46
    %90 = vmatprep.subr.mxu0 0.0
    %91 = vmatpush1.msra.mxu0 %v45
    %92 = vmatprep.subr.mxu0 0.0
    %93 = vmatpush1.msra.mxu0 %v44
    %94 = vmatprep.subr.mxu0 0.0
    %95 = vmatpush2.msra.mxu0 0.0
    %96 = vmatprep.subr.mxu0 0.0
    %97 = vmatpush2.msra.mxu0 0.0
    %98 = vmatprep.subr.mxu0 0.0
    %99 = vmatpush2.msra.mxu0 0.0
    %100 = vmatprep.subr.mxu0 0.0
    %101 = vmatpush2.msra.mxu0 0.0
    %102 = vmatprep.subr.mxu0 0.0
    %103 = vmatpush2.msra.mxu0 0.0
    %104 = vmatprep.subr.mxu0 0.0
    %105 = vmatpush2.msra.mxu0 0.0
    %106 = vmatprep.subr.mxu0 0.0
    %107 = vmatpush2.msra.mxu0 0.0
    %108 = vmatprep.subr.mxu0 0.0
    %109 = vmatpush2.msra.mxu0 0.0
    %110 = vmatprep.subr.mxu0 0.0
    %111 = vmatpush2.msra.mxu0 0.0
    %112 = vmatprep.subr.mxu0 0.0
    %113 = vmatpush2.msra.mxu0 0.0
    %114 = vmatprep.subr.mxu0 0.0
    %115 = vmatpush2.msra.mxu0 0.0
    %116 = vmatprep.subr.mxu0 0.0
    %117 = vmatpush2.msra.mxu0 0.0
    %118 = vmatprep.subr.mxu0 0.0
    %119 = vmatpush2.msra.mxu0 0.0
    %120 = vmatprep.subr.mxu0 0.0
    %121 = vmatpush2.msra.mxu0 0.0
    %122 = vmatprep.subr.mxu0 0.0
    %123 = vmatpush2.msra.mxu0 0.0
    %124 = vmatprep.subr.mxu0 0.0
    %125 = vmatpush2.msra.mxu0 0.0
    %126 = vmatprep.mubr.f32.mxu0 0.0
    %127 = vmatmul.mubr.f32.gmra.mxu0 %v57
    %v128 = vpop.f32.mrf.mxu0
    %v129 = vadd.f32 %v53, %v128
    %v130 = vpop.f32.mrf.mxu0
    %131 = vmatprep.mubr.f32.mxu0 0.0
    %132 = vmatmul.mubr.f32.gmra.mxu0 %v60
    %v133 = vpop.f32.mrf.mxu0
    %v134 = vadd.f32 %v53, %v133
    %v135 = vpop.f32.mrf.mxu0
    %136 = vdwg.mxu0
    %vm137 = vcmask 785408
    %138 = vst.msk [vmem:[%s3] sm:$0xff] %vm137, %v129
    %139 = vst.msk [vmem:[%s3 + $0x8] sm:$0xff] %vm137, %v134
    // Predicated region
    $region22: #{quant_attention_forward.3} parent=1 // pred_check
      _
    $region23: #{quant_attention_forward.3} parent=1 // pred_check_branch
      %141 = sbr.rel (0) target = $region25
    $region24: #{quant_attention_forward.3} parent=1 // pred_region
      _
    $region25: #{quant_attention_forward.3} parent=1 // pred_fallthru
      _
    // Predicated region
    $region26: #{quant_attention_forward.3} parent=1 // pred_check
      _
    $region27: #{quant_attention_forward.3} parent=1 // pred_check_branch
      %143 = sbr.rel (0) target = $region29
    $region28: #{quant_attention_forward.3} parent=1 // pred_region
      _
    $region29: #{quant_attention_forward.3} parent=1 // pred_fallthru
      _
    %144 = vsyncpa [#allocation3], 1
    %145 = vsyncpa [#allocation5], 1

// kernel: quant_attention_forward.5
$region0: #{quant_attention_forward.5}
  #allocation0 [shape = 'u32[]', space=smem, size = 0x4, offset = 0x4, fixed_abs, tag = 'smem constant byte address 0x4 - core index']
  #allocation1 [shape = 'u32[144,128]{1,0:T(1,128)}', space=vmem, size = 0x12000, scoped, tag = 'internal scratch']
  %s0 = inlined_call_operand.vmem [shape: f32[16,32], index: 0, kind: input, shape index: {}]
  %s1 = inlined_call_operand.vmem [shape: f32[32,32], index: 1, kind: input, shape index: {}]
  %s2 = inlined_call_operand.vmem [shape: f32[1,32], index: 2, kind: input, shape index: {}]
  %s3 = inlined_call_operand.hbm [shape: f32[16,32], index: 3, kind: output, shape index: {}]
  %s4 = sld [smem:[#allocation0]]
  $region22: #{quant_attention_forward.5} parent=0
    _
  %s6 = ssub.s32 1, %s4
  %s7 = scalar_select 0, %s6, %s4
  $region1: #{quant_attention_forward.5} parent=0
    #allocation2 [shape = 'u8[8192]{0}', space=vmem, size = 0x2000, scoped, tag = 'output window, operand 0, single buffered']
    #allocation3 [shape = 's32[1]{0}', space=sflag, size = 0x4, scoped, tag = 'scoped memory for quant_attention_forward.5']
    %8 = vsyncpa [#allocation3], 0
    // Predicated region
    $region2: #{quant_attention_forward.5} parent=1 // pred_check
      _
    $region3: #{quant_attention_forward.5} parent=1 // pred_check_branch
      %10 = sbr.rel (0) target = $region5
    $region4: #{quant_attention_forward.5} parent=1 // pred_region
      _
    $region5: #{quant_attention_forward.5} parent=1 // pred_fallthru
      _
    // Predicated region
    $region6: #{quant_attention_forward.5} parent=1 // pred_check
      _
    $region7: #{quant_attention_forward.5} parent=1 // pred_check_branch
      %12 = sbr.rel (0) target = $region9
    $region8: #{quant_attention_forward.5} parent=1 // pred_region
      _
    $region9: #{quant_attention_forward.5} parent=1 // pred_fallthru
      _
    // Predicated region
    $region10: #{quant_attention_forward.5} parent=1 // pred_check
      _
    $region11: #{quant_attention_forward.5} parent=1 // pred_check_branch
      %14 = sbr.rel (0) target = $region13
    $region12: #{quant_attention_forward.5} parent=1 // pred_region
      _
    $region13: #{quant_attention_forward.5} parent=1 // pred_fallthru
      _
    %v15 = vld [vmem:[%s0] sm:$0xff]
    %v16 = vld [vmem:[%s0 + $0x8] sm:$0xff]
    %v17 = vld [vmem:[%s1] sm:$0xff]
    %v18 = vld [vmem:[%s1 + $0x8] sm:$0xff]
    %v19 = vld [vmem:[%s1 + $0x10] sm:$0xff]
    %v20 = vld [vmem:[%s1 + $0x18] sm:$0xff]
    %v21 = vld [vmem:[%s2] sm:$0x1]
    %v23 = vlaneseq
    %v24 = vshrl.u32 %v23, 7
    %v25 = vsub.s32 0, %v24
    %v26 = vrot.slane %v21, %v25
    %vm28 = vcmask 261120
    %v30 = vsel %vm28, %v15, 0
    %v33 = vsel %vm28, %v16, 0
    %35 = vmatprep.subr.mxu0 0.0
    %36 = vmatpush1.msra.mxu0 0.0
    %37 = vmatprep.subr.mxu0 0.0
    %38 = vmatpush1.msra.mxu0 0.0
    %39 = vmatprep.subr.mxu0 0.0
    %40 = vmatpush1.msra.mxu0 0.0
    %41 = vmatprep.subr.mxu0 0.0
    %42 = vmatpush1.msra.mxu0 0.0
    %43 = vmatprep.subr.mxu0 0.0
    %44 = vmatpush1.msra.mxu0 0.0
    %45 = vmatprep.subr.mxu0 0.0
    %46 = vmatpush1.msra.mxu0 0.0
    %47 = vmatprep.subr.mxu0 0.0
    %48 = vmatpush1.msra.mxu0 0.0
    %49 = vmatprep.subr.mxu0 0.0
    %50 = vmatpush1.msra.mxu0 0.0
    %51 = vmatprep.subr.mxu0 0.0
    %52 = vmatpush1.msra.mxu0 0.0
    %53 = vmatprep.subr.mxu0 0.0
    %54 = vmatpush1.msra.mxu0 0.0
    %55 = vmatprep.subr.mxu0 0.0
    %56 = vmatpush1.msra.mxu0 0.0
    %57 = vmatprep.subr.mxu0 0.0
    %58 = vmatpush1.msra.mxu0 0.0
    %59 = vmatprep.subr.mxu0 0.0
    %60 = vmatpush1.msra.mxu0 %v20
    %61 = vmatprep.subr.mxu0 0.0
    %62 = vmatpush1.msra.mxu0 %v19
    %63 = vmatprep.subr.mxu0 0.0
    %64 = vmatpush1.msra.mxu0 %v18
    %65 = vmatprep.subr.mxu0 0.0
    %66 = vmatpush1.msra.mxu0 %v17
    %67 = vmatprep.subr.mxu0 0.0
    %68 = vmatpush2.msra.mxu0 0.0
    %69 = vmatprep.subr.mxu0 0.0
    %70 = vmatpush2.msra.mxu0 0.0
    %71 = vmatprep.subr.mxu0 0.0
    %72 = vmatpush2.msra.mxu0 0.0
    %73 = vmatprep.subr.mxu0 0.0
    %74 = vmatpush2.msra.mxu0 0.0
    %75 = vmatprep.subr.mxu0 0.0
    %76 = vmatpush2.msra.mxu0 0.0
    %77 = vmatprep.subr.mxu0 0.0
    %78 = vmatpush2.msra.mxu0 0.0
    %79 = vmatprep.subr.mxu0 0.0
    %80 = vmatpush2.msra.mxu0 0.0
    %81 = vmatprep.subr.mxu0 0.0
    %82 = vmatpush2.msra.mxu0 0.0
    %83 = vmatprep.subr.mxu0 0.0
    %84 = vmatpush2.msra.mxu0 0.0
    %85 = vmatprep.subr.mxu0 0.0
    %86 = vmatpush2.msra.mxu0 0.0
    %87 = vmatprep.subr.mxu0 0.0
    %88 = vmatpush2.msra.mxu0 0.0
    %89 = vmatprep.subr.mxu0 0.0
    %90 = vmatpush2.msra.mxu0 0.0
    %91 = vmatprep.subr.mxu0 0.0
    %92 = vmatpush2.msra.mxu0 0.0
    %93 = vmatprep.subr.mxu0 0.0
    %94 = vmatpush2.msra.mxu0 0.0
    %95 = vmatprep.subr.mxu0 0.0
    %96 = vmatpush2.msra.mxu0 0.0
    %97 = vmatprep.subr.mxu0 0.0
    %98 = vmatpush2.msra.mxu0 0.0
    %99 = vmatprep.mubr.f32.mxu0 0.0
    %100 = vmatmul.mubr.f32.gmra.mxu0 %v30
    %v101 = vpop.f32.mrf.mxu0
    %v102 = vadd.f32 %v26, %v101
    %v103 = vpop.f32.mrf.mxu0
    %104 = vmatprep.mubr.f32.mxu0 0.0
    %105 = vmatmul.mubr.f32.gmra.mxu0 %v33
    %v106 = vpop.f32.mrf.mxu0
    %v107 = vadd.f32 %v26, %v106
    %v108 = vpop.f32.mrf.mxu0
    %109 = vdwg.mxu0
    %110 = vst.msk [vmem:[#allocation2] sm:$0xff] %vm28, %v102
    %111 = vst.msk [vmem:[#allocation2 + $0x8] sm:$0xff] %vm28, %v107
    // Predicated region
    $region14: #{quant_attention_forward.5} parent=1 // pred_check
      _
    $region15: #{quant_attention_forward.5} parent=1 // pred_check_branch
      %113 = sbr.rel (0) target = $region17
    $region16: #{quant_attention_forward.5} parent=1 // pred_region
      %s115 = ssub.s32 256, 256
      %116 = vsyncadd [#allocation3], %s115
      %s117 = sshll.u32 [#allocation2], 4
      %s118 = int_to_ptr.vmem [resolvable:$true] %s117
      %123 = dma.vmem_to_hbm [thread:$0]  %s118, 256, %s3, [#allocation3], 128, 128, 8
    $region17: #{quant_attention_forward.5} parent=1 // pred_fallthru
      _
    // Predicated region
    $region18: #{quant_attention_forward.5} parent=1 // pred_check
      _
    $region19: #{quant_attention_forward.5} parent=1 // pred_check_branch
      %125 = sbr.rel (0) target = $region21
    $region20: #{quant_attention_forward.5} parent=1 // pred_region
      %126 = dma.done [#allocation3], 256
    $region21: #{quant_attention_forward.5} parent=1 // pred_fallthru
      _
    %127 = vsyncpa [#allocation3], 1

// kernel: quant_attention_forward.4
$region0: #{quant_attention_forward.4}
  #allocation0 [shape = 'u32[]', space=smem, size = 0x4, offset = 0x4, fixed_abs, tag = 'smem constant byte address 0x4 - core index']
  #allocation1 [shape = 'u32[144,128]{1,0:T(1,128)}', space=vmem, size = 0x12000, scoped, tag = 'internal scratch']
  %s0 = inlined_call_operand.vmem [shape: f32[2,8,96], index: 0, kind: input, shape index: {}]
  %s1 = inlined_call_operand.vmem [shape: f32[2,8,32], index: 1, kind: output, shape index: {0}]
  %s2 = inlined_call_operand.hbm [shape: f32[2,4,8,8], index: 2, kind: output, shape index: {1}]
  %3 = xla_tuple %s1, %s2
  %s4 = sld [smem:[#allocation0]]
  $region45: #{quant_attention_forward.4} parent=0
    _
  %s6 = ssub.s32 1, %s4
  %s7 = scalar_select 0, %s6, %s4
  $region1: #{quant_attention_forward.4} parent=0
    #allocation2 [shape = 'u8[32768]{0}', space=vmem, size = 0x8000, scoped, tag = 'output window, operand 1']
    #allocation3 [shape = 's32[2]{0}', space=sflag, size = 0x8, scoped, tag = 'scoped memory for quant_attention_forward.4']
    %8 = vsyncpa [#allocation3], 0
    %s9 = scalar_lea.sflag [#allocation3], 1
    %10 = vsyncpa %s9, 0
    loop: start=0, step=1, limit=4
    $region2: #{quant_attention_forward.4} parent=1 // loop_pre_header
      _
    $region3: #{quant_attention_forward.4} parent=1 // loop_header
      %s12 = sphi 0, %s16
      %p13 = scmp.ge.s32.totalorder %s12, 4
      %s22 = sphi 0, %s24
      %s25 = sphi 0, %s22
      %s26 = sphi 0, %s25
      %s42 = sphi 0, %s26
      %s48 = sphi 0, %s50
      %s51 = sphi 0, %s48
      %s52 = sphi 0, %s51
      %s68 = sphi 0, %s52
      %s74 = sphi 0, %s76
      %s77 = sphi 0, %s74
      %s78 = sphi 0, %s77
      %s94 = sphi 0, %s78
    $region4: #{quant_attention_forward.4} parent=1 // loop_header_branch
      %15 = sbr.rel (%p13) target = $region8
    $region5: #{quant_attention_forward.4} parent=1 // loop_body
      %s17 = ssub.s32 %s12, 1
      %s18 = ssub.s32 %s12, 2
      %s19 = sadd.s32 %s12, 1
      %s20 = ssub.s32 %s12, %s19
      %p21 = scmp.eq.s32.totalorder %s20, 0
      %s23 = sadd.s32 %s22, 1
      %s24 = scalar_select %p21, %s22, %s23
      %p27 = pneg %p21
      %p28 = scmp.eq.s32.totalorder %s12, 1
      %p29 = por %p27, %p28
      %p30 = scmp.ne.s32.totalorder %s22, %s25
      %p31 = scmp.eq.s32.totalorder %s12, 0
      %p32 = por %p30, %p31
      %p33 = scmp.ne.s32.totalorder %s22, %s25
      %p34 = scmp.eq.s32.totalorder %s17, 1
      %p35 = por %p33, %p34
      %p36 = scmp.ne.s32.totalorder %s25, %s26
      %p37 = scmp.eq.s32.totalorder %s17, 0
      %p38 = por %p36, %p37
      %p39 = scmp.ne.s32.totalorder %s25, %s26
      %p40 = scmp.eq.s32.totalorder %s18, 1
      %p41 = por %p39, %p40
      %p43 = scmp.ne.s32.totalorder %s26, %s42
      %p44 = scmp.eq.s32.totalorder %s18, 0
      %p45 = por %p43, %p44
      %s46 = ssub.s32 %s12, %s19
      %p47 = scmp.eq.s32.totalorder %s46, 0
      %s49 = sadd.s32 %s48, 1
      %s50 = scalar_select %p47, %s48, %s49
      %p53 = pneg %p47
      %p54 = scmp.eq.s32.totalorder %s12, 1
      %p55 = por %p53, %p54
      %p56 = scmp.ne.s32.totalorder %s48, %s51
      %p57 = scmp.eq.s32.totalorder %s12, 0
      %p58 = por %p56, %p57
      %p59 = scmp.ne.s32.totalorder %s48, %s51
      %p60 = scmp.eq.s32.totalorder %s17, 1
      %p61 = por %p59, %p60
      %p62 = scmp.ne.s32.totalorder %s51, %s52
      %p63 = scmp.eq.s32.totalorder %s17, 0
      %p64 = por %p62, %p63
      %p65 = scmp.ne.s32.totalorder %s51, %s52
      %p66 = scmp.eq.s32.totalorder %s18, 1
      %p67 = por %p65, %p66
      %p69 = scmp.ne.s32.totalorder %s52, %s68
      %p70 = scmp.eq.s32.totalorder %s18, 0
      %p71 = por %p69, %p70
      %s72 = ssub.s32 %s12, %s19
      %p73 = scmp.eq.s32.totalorder %s72, 0
      %s75 = sadd.s32 %s74, 1
      %s76 = scalar_select %p73, %s74, %s75
      %p79 = pneg %p73
      %p80 = scmp.eq.s32.totalorder %s12, 1
      %p81 = por %p79, %p80
      %p82 = scmp.ne.s32.totalorder %s74, %s77
      %p83 = scmp.eq.s32.totalorder %s12, 0
      %p84 = por %p82, %p83
      %p85 = scmp.ne.s32.totalorder %s74, %s77
      %p86 = scmp.eq.s32.totalorder %s17, 1
      %p87 = por %p85, %p86
      %p88 = scmp.ne.s32.totalorder %s77, %s78
      %p89 = scmp.eq.s32.totalorder %s17, 0
      %p90 = por %p88, %p89
      %p91 = scmp.ne.s32.totalorder %s77, %s78
      %p92 = scmp.eq.s32.totalorder %s18, 1
      %p93 = por %p91, %p92
      %p95 = scmp.ne.s32.totalorder %s78, %s94
      %p96 = scmp.eq.s32.totalorder %s18, 0
      %p97 = por %p95, %p96
      %p98 = scmp.le.s32.totalorder 1, %s12
      %p99 = scmp.lt.s32.totalorder %s12, 3
      %p100 = pnand %p98, %p99
      %p101 = pneg %p100
      // Predicated region
      $region9: #{quant_attention_forward.4} parent=5 // pred_check
        _
      $region10: #{quant_attention_forward.4} parent=5 // pred_check_branch
        %103 = sbr.rel (%p100) target = $region12
      $region11: #{quant_attention_forward.4} parent=5 // pred_region
        %s104 = ssub.s32 %s12, 1
      $region12: #{quant_attention_forward.4} parent=5 // pred_fallthru
        _
      %p105 = scmp.lt.s32.totalorder %s12, 2
      // Predicated region
      $region13: #{quant_attention_forward.4} parent=5 // pred_check
        %p106 = pneg %p105
      $region14: #{quant_attention_forward.4} parent=5 // pred_check_branch
        %108 = sbr.rel (%p106) target = $region16
      $region15: #{quant_attention_forward.4} parent=5 // pred_region
        // Predicated region
        $region17: #{quant_attention_forward.4} parent=15 // pred_check
          %p109 = pneg %p32
        $region18: #{quant_attention_forward.4} parent=15 // pred_check_branch
          %111 = sbr.rel (%p109) target = $region20
        $region19: #{quant_attention_forward.4} parent=15 // pred_region
          %p112 = scmp.lt.s32.totalorder %s12, 1
          %s113 = scalar_select %p112, %s12, 1
          %s114 = smul.addr %s113, 8
          %s115 = scalar_lea.vmem %s0, %s114
        $region20: #{quant_attention_forward.4} parent=15 // pred_fallthru
          _
      $region16: #{quant_attention_forward.4} parent=5 // pred_fallthru
        _
      %p116 = scmp.le.s32.totalorder 1, %s12
      %p117 = scmp.lt.s32.totalorder %s12, 3
      %p118 = pnand %p116, %p117
      %p119 = pneg %p118
      // Predicated region
      $region21: #{quant_attention_forward.4} parent=5 // pred_check
        _
      $region22: #{quant_attention_forward.4} parent=5 // pred_check_branch
        %121 = sbr.rel (%p118) target = $region24
      $region23: #{quant_attention_forward.4} parent=5 // pred_region
        %s122 = ssub.s32 %s12, 1
        %p123 = scmp.lt.s32.totalorder %s17, 1
        %s124 = scalar_select %p123, %s17, 1
        %s125 = smul.addr %s124, 8
        %s126 = scalar_lea.vmem %s0, %s125
        %p127 = pneg %p38
        %p128 = pneg %p35
        %p129 = pneg %p64
        %p130 = pneg %p61
        %p131 = scmp.lt.s32.totalorder %s17, 1
        %s132 = scalar_select %p131, %s17, 1
        %s133 = smul.addr %s132, 8
        %s134 = scalar_lea.vmem %s1, %s133
        %p135 = pneg %p90
        %p136 = pneg %p87
        %s137 = sand.u32 %s77, 1
        %s138 = scalar_lea.sflag [#allocation3], %s137
        %s139 = sand.u32 %s77, 1
        %s140 = smul.addr %s139, 32
        %s141 = scalar_lea.vmem [#allocation2], %s140
        %p142 = scmp.lt.s32.totalorder %s17, 1
        %s143 = scalar_select %p142, %s17, 1
        %s144 = smul.addr %s143, 8
        %s145 = scalar_lea.vmem %s0, %s144
        %p146 = scmp.lt.s32.totalorder %s17, 1
        %s147 = scalar_select %p146, %s17, 1
        %s148 = smul.addr %s147, 8
        %s149 = scalar_lea.vmem %s1, %s148
        %v150 = vld [vmem:[%s145] sm:$0xff]
        %152 = vrot.lane.b32.xlu0 %v150, 96
        %v153 = vpop.permute.xlu0 %152
        %vm154 = vcmask 64512
        %v155 = vsel %vm154, %v150, 0
        %v157 = vsel %vm154, %v153, 0
        %159 = vmatprep.subr.mxu0 0.0
        %160 = vmatpush1.xpose.msra.mxu0 0.0
        %161 = vmatprep.subr.mxu0 0.0
        %162 = vmatpush1.xpose.msra.mxu0 0.0
        %163 = vmatprep.subr.mxu0 0.0
        %164 = vmatpush1.xpose.msra.mxu0 0.0
        %165 = vmatprep.subr.mxu0 0.0
        %166 = vmatpush1.xpose.msra.mxu0 0.0
        %167 = vmatprep.subr.mxu0 0.0
        %168 = vmatpush1.xpose.msra.mxu0 0.0
        %169 = vmatprep.subr.mxu0 0.0
        %170 = vmatpush1.xpose.msra.mxu0 0.0
        %171 = vmatprep.subr.mxu0 0.0
        %172 = vmatpush1.xpose.msra.mxu0 0.0
        %173 = vmatprep.subr.mxu0 0.0
        %174 = vmatpush1.xpose.msra.mxu0 0.0
        %175 = vmatprep.subr.mxu0 0.0
        %176 = vmatpush1.xpose.msra.mxu0 0.0
        %177 = vmatprep.subr.mxu0 0.0
        %178 = vmatpush1.xpose.msra.mxu0 0.0
        %179 = vmatprep.subr.mxu0 0.0
        %180 = vmatpush1.xpose.msra.mxu0 0.0
        %181 = vmatprep.subr.mxu0 0.0
        %182 = vmatpush1.xpose.msra.mxu0 0.0
        %183 = vmatprep.subr.mxu0 0.0
        %184 = vmatpush1.xpose.msra.mxu0 0.0
        %185 = vmatprep.subr.mxu0 0.0
        %186 = vmatpush1.xpose.msra.mxu0 0.0
        %187 = vmatprep.subr.mxu0 0.0
        %188 = vmatpush1.xpose.msra.mxu0 0.0
        %189 = vmatprep.subr.mxu0 0.0
        %190 = vmatpush1.xpose.msra.mxu0 %v157
        %191 = vmatprep.subr.mxu0 0.0
        %192 = vmatpush2.xpose.msra.mxu0 0.0
        %193 = vmatprep.subr.mxu0 0.0
        %194 = vmatpush2.xpose.msra.mxu0 0.0
        %195 = vmatprep.subr.mxu0 0.0
        %196 = vmatpush2.xpose.msra.mxu0 0.0
        %197 = vmatprep.subr.mxu0 0.0
        %198 = vmatpush2.xpose.msra.mxu0 0.0
        %199 = vmatprep.subr.mxu0 0.0
        %200 = vmatpush2.xpose.msra.mxu0 0.0
        %201 = vmatprep.subr.mxu0 0.0
        %202 = vmatpush2.xpose.msra.mxu0 0.0
        %203 = vmatprep.subr.mxu0 0.0
        %204 = vmatpush2.xpose.msra.mxu0 0.0
        %205 = vmatprep.subr.mxu0 0.0
        %206 = vmatpush2.xpose.msra.mxu0 0.0
        %207 = vmatprep.subr.mxu0 0.0
        %208 = vmatpush2.xpose.msra.mxu0 0.0
        %209 = vmatprep.subr.mxu0 0.0
        %210 = vmatpush2.xpose.msra.mxu0 0.0
        %211 = vmatprep.subr.mxu0 0.0
        %212 = vmatpush2.xpose.msra.mxu0 0.0
        %213 = vmatprep.subr.mxu0 0.0
        %214 = vmatpush2.xpose.msra.mxu0 0.0
        %215 = vmatprep.subr.mxu0 0.0
        %216 = vmatpush2.xpose.msra.mxu0 0.0
        %217 = vmatprep.subr.mxu0 0.0
        %218 = vmatpush2.xpose.msra.mxu0 0.0
        %219 = vmatprep.subr.mxu0 0.0
        %220 = vmatpush2.xpose.msra.mxu0 0.0
        %221 = vmatprep.subr.mxu0 0.0
        %222 = vmatpush2.xpose.msra.mxu0 0.0
        %223 = vmatprep.mubr.f32.mxu0 0.0
        %224 = vmatmul.mubr.f32.gmra.mxu0 %v155
        %v225 = vpop.f32.mrf.mxu0
        %v226 = vadd.f32 0.0, %v225
        %v227 = vpop.f32.mrf.mxu0
        %228 = vdwg.mxu0
        %v229 = vsel %vm154, %v226, -inf
        %230 = vmax.xlane.f32.xlu0 %v229
        %v231 = vpop.xlane.xlu0 %230
        %v232 = vsub.f32 %v226, %v231
        %v233 = vmul.f32 %v232, 1.442695
        %v234 = vpow.pop %v233
        %v235 = vsel %vm154, %v234, 0.0
        %236 = vadd.xlane.f32.xlu0 %v235
        %v237 = vpop.xlane.xlu0 %236
        %v238 = vrcp.pop %v237
        %v239 = vmul.f32 %v234, %v238
        %240 = vrot.lane.b32.xlu0 %v150, 64
        %v241 = vpop.permute.xlu0 %240
        %v244 = vsel %vm154, %v239, 0
        %246 = vmatprep.subr.mxu0 0.0
        %247 = vmatpush1.msra.mxu0 0.0
        %248 = vmatprep.subr.mxu0 0.0
        %249 = vmatpush1.msra.mxu0 0.0
        %250 = vmatprep.subr.mxu0 0.0
        %251 = vmatpush1.msra.mxu0 0.0
        %252 = vmatprep.subr.mxu0 0.0
        %253 = vmatpush1.msra.mxu0 0.0
        %254 = vmatprep.subr.mxu0 0.0
        %255 = vmatpush1.msra.mxu0 0.0
        %256 = vmatprep.subr.mxu0 0.0
        %257 = vmatpush1.msra.mxu0 0.0
        %258 = vmatprep.subr.mxu0 0.0
        %259 = vmatpush1.msra.mxu0 0.0
        %260 = vmatprep.subr.mxu0 0.0
        %261 = vmatpush1.msra.mxu0 0.0
        %262 = vmatprep.subr.mxu0 0.0
        %263 = vmatpush1.msra.mxu0 0.0
        %264 = vmatprep.subr.mxu0 0.0
        %265 = vmatpush1.msra.mxu0 0.0
        %266 = vmatprep.subr.mxu0 0.0
        %267 = vmatpush1.msra.mxu0 0.0
        %268 = vmatprep.subr.mxu0 0.0
        %269 = vmatpush1.msra.mxu0 0.0
        %270 = vmatprep.subr.mxu0 0.0
        %271 = vmatpush1.msra.mxu0 0.0
        %272 = vmatprep.subr.mxu0 0.0
        %273 = vmatpush1.msra.mxu0 0.0
        %274 = vmatprep.subr.mxu0 0.0
        %275 = vmatpush1.msra.mxu0 0.0
        %276 = vmatprep.subr.mxu0 0.0
        %277 = vmatpush1.msra.mxu0 %v241
        %278 = vmatprep.subr.mxu0 0.0
        %279 = vmatpush2.msra.mxu0 0.0
        %280 = vmatprep.subr.mxu0 0.0
        %281 = vmatpush2.msra.mxu0 0.0
        %282 = vmatprep.subr.mxu0 0.0
        %283 = vmatpush2.msra.mxu0 0.0
        %284 = vmatprep.subr.mxu0 0.0
        %285 = vmatpush2.msra.mxu0 0.0
        %286 = vmatprep.subr.mxu0 0.0
        %287 = vmatpush2.msra.mxu0 0.0
        %288 = vmatprep.subr.mxu0 0.0
        %289 = vmatpush2.msra.mxu0 0.0
        %290 = vmatprep.subr.mxu0 0.0
        %291 = vmatpush2.msra.mxu0 0.0
        %292 = vmatprep.subr.mxu0 0.0
        %293 = vmatpush2.msra.mxu0 0.0
        %294 = vmatprep.subr.mxu0 0.0
        %295 = vmatpush2.msra.mxu0 0.0
        %296 = vmatprep.subr.mxu0 0.0
        %297 = vmatpush2.msra.mxu0 0.0
        %298 = vmatprep.subr.mxu0 0.0
        %299 = vmatpush2.msra.mxu0 0.0
        %300 = vmatprep.subr.mxu0 0.0
        %301 = vmatpush2.msra.mxu0 0.0
        %302 = vmatprep.subr.mxu0 0.0
        %303 = vmatpush2.msra.mxu0 0.0
        %304 = vmatprep.subr.mxu0 0.0
        %305 = vmatpush2.msra.mxu0 0.0
        %306 = vmatprep.subr.mxu0 0.0
        %307 = vmatpush2.msra.mxu0 0.0
        %308 = vmatprep.subr.mxu0 0.0
        %309 = vmatpush2.msra.mxu0 0.0
        %310 = vmatprep.mubr.f32.mxu0 0.0
        %311 = vmatmul.mubr.f32.gmra.mxu0 %v244
        %v312 = vpop.f32.mrf.mxu0
        %v313 = vadd.f32 0.0, %v312
        %v314 = vpop.f32.mrf.mxu0
        %315 = vdwg.mxu0
        %316 = vst.msk [vmem:[%s141] sm:$0xff] %vm154, %v239
        %317 = vrot.lane.b32.xlu0 %v150, 120
        %v318 = vpop.permute.xlu0 %317
        %319 = vrot.lane.b32.xlu0 %v150, 88
        %v320 = vpop.permute.xlu0 %319
        %v321 = vsel %vm154, %v318, 0
        %v323 = vsel %vm154, %v320, 0
        %325 = vmatprep.subr.mxu0 0.0
        %326 = vmatpush1.xpose.msra.mxu0 0.0
        %327 = vmatprep.subr.mxu0 0.0
        %328 = vmatpush1.xpose.msra.mxu0 0.0
        %329 = vmatprep.subr.mxu0 0.0
        %330 = vmatpush1.xpose.msra.mxu0 0.0
        %331 = vmatprep.subr.mxu0 0.0
        %332 = vmatpush1.xpose.msra.mxu0 0.0
        %333 = vmatprep.subr.mxu0 0.0
        %334 = vmatpush1.xpose.msra.mxu0 0.0
        %335 = vmatprep.subr.mxu0 0.0
        %336 = vmatpush1.xpose.msra.mxu0 0.0
        %337 = vmatprep.subr.mxu0 0.0
        %338 = vmatpush1.xpose.msra.mxu0 0.0
        %339 = vmatprep.subr.mxu0 0.0
        %340 = vmatpush1.xpose.msra.mxu0 0.0
        %341 = vmatprep.subr.mxu0 0.0
        %342 = vmatpush1.xpose.msra.mxu0 0.0
        %343 = vmatprep.subr.mxu0 0.0
        %344 = vmatpush1.xpose.msra.mxu0 0.0
        %345 = vmatprep.subr.mxu0 0.0
        %346 = vmatpush1.xpose.msra.mxu0 0.0
        %347 = vmatprep.subr.mxu0 0.0
        %348 = vmatpush1.xpose.msra.mxu0 0.0
        %349 = vmatprep.subr.mxu0 0.0
        %350 = vmatpush1.xpose.msra.mxu0 0.0
        %351 = vmatprep.subr.mxu0 0.0
        %352 = vmatpush1.xpose.msra.mxu0 0.0
        %353 = vmatprep.subr.mxu0 0.0
        %354 = vmatpush1.xpose.msra.mxu0 0.0
        %355 = vmatprep.subr.mxu0 0.0
        %356 = vmatpush1.xpose.msra.mxu0 %v323
        %357 = vmatprep.subr.mxu0 0.0
        %358 = vmatpush2.xpose.msra.mxu0 0.0
        %359 = vmatprep.subr.mxu0 0.0
        %360 = vmatpush2.xpose.msra.mxu0 0.0
        %361 = vmatprep.subr.mxu0 0.0
        %362 = vmatpush2.xpose.msra.mxu0 0.0
        %363 = vmatprep.subr.mxu0 0.0
        %364 = vmatpush2.xpose.msra.mxu0 0.0
        %365 = vmatprep.subr.mxu0 0.0
        %366 = vmatpush2.xpose.msra.mxu0 0.0
        %367 = vmatprep.subr.mxu0 0.0
        %368 = vmatpush2.xpose.msra.mxu0 0.0
        %369 = vmatprep.subr.mxu0 0.0
        %370 = vmatpush2.xpose.msra.mxu0 0.0
        %371 = vmatprep.subr.mxu0 0.0
        %372 = vmatpush2.xpose.msra.mxu0 0.0
        %373 = vmatprep.subr.mxu0 0.0
        %374 = vmatpush2.xpose.msra.mxu0 0.0
        %375 = vmatprep.subr.mxu0 0.0
        %376 = vmatpush2.xpose.msra.mxu0 0.0
        %377 = vmatprep.subr.mxu0 0.0
        %378 = vmatpush2.xpose.msra.mxu0 0.0
        %379 = vmatprep.subr.mxu0 0.0
        %380 = vmatpush2.xpose.msra.mxu0 0.0
        %381 = vmatprep.subr.mxu0 0.0
        %382 = vmatpush2.xpose.msra.mxu0 0.0
        %383 = vmatprep.subr.mxu0 0.0
        %384 = vmatpush2.xpose.msra.mxu0 0.0
        %385 = vmatprep.subr.mxu0 0.0
        %386 = vmatpush2.xpose.msra.mxu0 0.0
        %387 = vmatprep.subr.mxu0 0.0
        %388 = vmatpush2.xpose.msra.mxu0 0.0
        %389 = vmatprep.mubr.f32.mxu0 0.0
        %390 = vmatmul.mubr.f32.gmra.mxu0 %v321
        %v391 = vpop.f32.mrf.mxu0
        %v392 = vadd.f32 0.0, %v391
        %v393 = vpop.f32.mrf.mxu0
        %394 = vdwg.mxu0
        %v395 = vsel %vm154, %v392, -inf
        %396 = vmax.xlane.f32.xlu0 %v395
        %v397 = vpop.xlane.xlu0 %396
        %v398 = vsub.f32 %v392, %v397
        %v399 = vmul.f32 %v398, 1.442695
        %v400 = vpow.pop %v399
        %v401 = vsel %vm154, %v400, 0.0
        %402 = vadd.xlane.f32.xlu0 %v401
        %v403 = vpop.xlane.xlu0 %402
        %v404 = vrcp.pop %v403
        %v405 = vmul.f32 %v400, %v404
        %406 = vrot.lane.b32.xlu0 %v150, 56
        %v407 = vpop.permute.xlu0 %406
        %v410 = vsel %vm154, %v405, 0
        %412 = vmatprep.subr.mxu0 0.0
        %413 = vmatpush1.msra.mxu0 0.0
        %414 = vmatprep.subr.mxu0 0.0
        %415 = vmatpush1.msra.mxu0 0.0
        %416 = vmatprep.subr.mxu0 0.0
        %417 = vmatpush1.msra.mxu0 0.0
        %418 = vmatprep.subr.mxu0 0.0
        %419 = vmatpush1.msra.mxu0 0.0
        %420 = vmatprep.subr.mxu0 0.0
        %421 = vmatpush1.msra.mxu0 0.0
        %422 = vmatprep.subr.mxu0 0.0
        %423 = vmatpush1.msra.mxu0 0.0
        %424 = vmatprep.subr.mxu0 0.0
        %425 = vmatpush1.msra.mxu0 0.0
        %426 = vmatprep.subr.mxu0 0.0
        %427 = vmatpush1.msra.mxu0 0.0
        %428 = vmatprep.subr.mxu0 0.0
        %429 = vmatpush1.msra.mxu0 0.0
        %430 = vmatprep.subr.mxu0 0.0
        %431 = vmatpush1.msra.mxu0 0.0
        %432 = vmatprep.subr.mxu0 0.0
        %433 = vmatpush1.msra.mxu0 0.0
        %434 = vmatprep.subr.mxu0 0.0
        %435 = vmatpush1.msra.mxu0 0.0
        %436 = vmatprep.subr.mxu0 0.0
        %437 = vmatpush1.msra.mxu0 0.0
        %438 = vmatprep.subr.mxu0 0.0
        %439 = vmatpush1.msra.mxu0 0.0
        %440 = vmatprep.subr.mxu0 0.0
        %441 = vmatpush1.msra.mxu0 0.0
        %442 = vmatprep.subr.mxu0 0.0
        %443 = vmatpush1.msra.mxu0 %v407
        %444 = vmatprep.subr.mxu0 0.0
        %445 = vmatpush2.msra.mxu0 0.0
        %446 = vmatprep.subr.mxu0 0.0
        %447 = vmatpush2.msra.mxu0 0.0
        %448 = vmatprep.subr.mxu0 0.0
        %449 = vmatpush2.msra.mxu0 0.0
        %450 = vmatprep.subr.mxu0 0.0
        %451 = vmatpush2.msra.mxu0 0.0
        %452 = vmatprep.subr.mxu0 0.0
        %453 = vmatpush2.msra.mxu0 0.0
        %454 = vmatprep.subr.mxu0 0.0
        %455 = vmatpush2.msra.mxu0 0.0
        %456 = vmatprep.subr.mxu0 0.0
        %457 = vmatpush2.msra.mxu0 0.0
        %458 = vmatprep.subr.mxu0 0.0
        %459 = vmatpush2.msra.mxu0 0.0
        %460 = vmatprep.subr.mxu0 0.0
        %461 = vmatpush2.msra.mxu0 0.0
        %462 = vmatprep.subr.mxu0 0.0
        %463 = vmatpush2.msra.mxu0 0.0
        %464 = vmatprep.subr.mxu0 0.0
        %465 = vmatpush2.msra.mxu0 0.0
        %466 = vmatprep.subr.mxu0 0.0
        %467 = vmatpush2.msra.mxu0 0.0
        %468 = vmatprep.subr.mxu0 0.0
        %469 = vmatpush2.msra.mxu0 0.0
        %470 = vmatprep.subr.mxu0 0.0
        %471 = vmatpush2.msra.mxu0 0.0
        %472 = vmatprep.subr.mxu0 0.0
        %473 = vmatpush2.msra.mxu0 0.0
        %474 = vmatprep.subr.mxu0 0.0
        %475 = vmatpush2.msra.mxu0 0.0
        %476 = vmatprep.mubr.f32.mxu0 0.0
        %477 = vmatmul.mubr.f32.gmra.mxu0 %v410
        %v478 = vpop.f32.mrf.mxu0
        %v479 = vadd.f32 0.0, %v478
        %v480 = vpop.f32.mrf.mxu0
        %481 = vdwg.mxu0
        %s482 = scalar_lea.vmem %s141, 8 [#allocation2]
        %483 = vst.msk [vmem:[%s482] sm:$0xff] %vm154, %v405
        %484 = vrot.lane.b32.xlu0 %v150, 112
        %v485 = vpop.permute.xlu0 %484
        %486 = vrot.lane.b32.xlu0 %v150, 80
        %v487 = vpop.permute.xlu0 %486
        %v488 = vsel %vm154, %v485, 0
        %v490 = vsel %vm154, %v487, 0
        %492 = vmatprep.subr.mxu0 0.0
        %493 = vmatpush1.xpose.msra.mxu0 0.0
        %494 = vmatprep.subr.mxu0 0.0
        %495 = vmatpush1.xpose.msra.mxu0 0.0
        %496 = vmatprep.subr.mxu0 0.0
        %497 = vmatpush1.xpose.msra.mxu0 0.0
        %498 = vmatprep.subr.mxu0 0.0
        %499 = vmatpush1.xpose.msra.mxu0 0.0
        %500 = vmatprep.subr.mxu0 0.0
        %501 = vmatpush1.xpose.msra.mxu0 0.0
        %502 = vmatprep.subr.mxu0 0.0
        %503 = vmatpush1.xpose.msra.mxu0 0.0
        %504 = vmatprep.subr.mxu0 0.0
        %505 = vmatpush1.xpose.msra.mxu0 0.0
        %506 = vmatprep.subr.mxu0 0.0
        %507 = vmatpush1.xpose.msra.mxu0 0.0
        %508 = vmatprep.subr.mxu0 0.0
        %509 = vmatpush1.xpose.msra.mxu0 0.0
        %510 = vmatprep.subr.mxu0 0.0
        %511 = vmatpush1.xpose.msra.mxu0 0.0
        %512 = vmatprep.subr.mxu0 0.0
        %513 = vmatpush1.xpose.msra.mxu0 0.0
        %514 = vmatprep.subr.mxu0 0.0
        %515 = vmatpush1.xpose.msra.mxu0 0.0
        %516 = vmatprep.subr.mxu0 0.0
        %517 = vmatpush1.xpose.msra.mxu0 0.0
        %518 = vmatprep.subr.mxu0 0.0
        %519 = vmatpush1.xpose.msra.mxu0 0.0
        %520 = vmatprep.subr.mxu0 0.0
        %521 = vmatpush1.xpose.msra.mxu0 0.0
        %522 = vmatprep.subr.mxu0 0.0
        %523 = vmatpush1.xpose.msra.mxu0 %v490
        %524 = vmatprep.subr.mxu0 0.0
        %525 = vmatpush2.xpose.msra.mxu0 0.0
        %526 = vmatprep.subr.mxu0 0.0
        %527 = vmatpush2.xpose.msra.mxu0 0.0
        %528 = vmatprep.subr.mxu0 0.0
        %529 = vmatpush2.xpose.msra.mxu0 0.0
        %530 = vmatprep.subr.mxu0 0.0
        %531 = vmatpush2.xpose.msra.mxu0 0.0
        %532 = vmatprep.subr.mxu0 0.0
        %533 = vmatpush2.xpose.msra.mxu0 0.0
        %534 = vmatprep.subr.mxu0 0.0
        %535 = vmatpush2.xpose.msra.mxu0 0.0
        %536 = vmatprep.subr.mxu0 0.0
        %537 = vmatpush2.xpose.msra.mxu0 0.0
        %538 = vmatprep.subr.mxu0 0.0
        %539 = vmatpush2.xpose.msra.mxu0 0.0
        %540 = vmatprep.subr.mxu0 0.0
        %541 = vmatpush2.xpose.msra.mxu0 0.0
        %542 = vmatprep.subr.mxu0 0.0
        %543 = vmatpush2.xpose.msra.mxu0 0.0
        %544 = vmatprep.subr.mxu0 0.0
        %545 = vmatpush2.xpose.msra.mxu0 0.0
        %546 = vmatprep.subr.mxu0 0.0
        %547 = vmatpush2.xpose.msra.mxu0 0.0
        %548 = vmatprep.subr.mxu0 0.0
        %549 = vmatpush2.xpose.msra.mxu0 0.0
        %550 = vmatprep.subr.mxu0 0.0
        %551 = vmatpush2.xpose.msra.mxu0 0.0
        %552 = vmatprep.subr.mxu0 0.0
        %553 = vmatpush2.xpose.msra.mxu0 0.0
        %554 = vmatprep.subr.mxu0 0.0
        %555 = vmatpush2.xpose.msra.mxu0 0.0
        %556 = vmatprep.mubr.f32.mxu0 0.0
        %557 = vmatmul.mubr.f32.gmra.mxu0 %v488
        %v558 = vpop.f32.mrf.mxu0
        %v559 = vadd.f32 0.0, %v558
        %v560 = vpop.f32.mrf.mxu0
        %561 = vdwg.mxu0
        %v562 = vsel %vm154, %v559, -inf
        %563 = vmax.xlane.f32.xlu0 %v562
        %v564 = vpop.xlane.xlu0 %563
        %v565 = vsub.f32 %v559, %v564
        %v566 = vmul.f32 %v565, 1.442695
        %v567 = vpow.pop %v566
        %v568 = vsel %vm154, %v567, 0.0
        %569 = vadd.xlane.f32.xlu0 %v568
        %v570 = vpop.xlane.xlu0 %569
        %v571 = vrcp.pop %v570
        %v572 = vmul.f32 %v567, %v571
        %573 = vrot.lane.b32.xlu0 %v150, 48
        %v574 = vpop.permute.xlu0 %573
        %v577 = vsel %vm154, %v572, 0
        %579 = vmatprep.subr.mxu0 0.0
        %580 = vmatpush1.msra.mxu0 0.0
        %581 = vmatprep.subr.mxu0 0.0
        %582 = vmatpush1.msra.mxu0 0.0
        %583 = vmatprep.subr.mxu0 0.0
        %584 = vmatpush1.msra.mxu0 0.0
        %585 = vmatprep.subr.mxu0 0.0
        %586 = vmatpush1.msra.mxu0 0.0
        %587 = vmatprep.subr.mxu0 0.0
        %588 = vmatpush1.msra.mxu0 0.0
        %589 = vmatprep.subr.mxu0 0.0
        %590 = vmatpush1.msra.mxu0 0.0
        %591 = vmatprep.subr.mxu0 0.0
        %592 = vmatpush1.msra.mxu0 0.0
        %593 = vmatprep.subr.mxu0 0.0
        %594 = vmatpush1.msra.mxu0 0.0
        %595 = vmatprep.subr.mxu0 0.0
        %596 = vmatpush1.msra.mxu0 0.0
        %597 = vmatprep.subr.mxu0 0.0
        %598 = vmatpush1.msra.mxu0 0.0
        %599 = vmatprep.subr.mxu0 0.0
        %600 = vmatpush1.msra.mxu0 0.0
        %601 = vmatprep.subr.mxu0 0.0
        %602 = vmatpush1.msra.mxu0 0.0
        %603 = vmatprep.subr.mxu0 0.0
        %604 = vmatpush1.msra.mxu0 0.0
        %605 = vmatprep.subr.mxu0 0.0
        %606 = vmatpush1.msra.mxu0 0.0
        %607 = vmatprep.subr.mxu0 0.0
        %608 = vmatpush1.msra.mxu0 0.0
        %609 = vmatprep.subr.mxu0 0.0
        %610 = vmatpush1.msra.mxu0 %v574
        %611 = vmatprep.subr.mxu0 0.0
        %612 = vmatpush2.msra.mxu0 0.0
        %613 = vmatprep.subr.mxu0 0.0
        %614 = vmatpush2.msra.mxu0 0.0
        %615 = vmatprep.subr.mxu0 0.0
        %616 = vmatpush2.msra.mxu0 0.0
        %617 = vmatprep.subr.mxu0 0.0
        %618 = vmatpush2.msra.mxu0 0.0
        %619 = vmatprep.subr.mxu0 0.0
        %620 = vmatpush2.msra.mxu0 0.0
        %621 = vmatprep.subr.mxu0 0.0
        %622 = vmatpush2.msra.mxu0 0.0
        %623 = vmatprep.subr.mxu0 0.0
        %624 = vmatpush2.msra.mxu0 0.0
        %625 = vmatprep.subr.mxu0 0.0
        %626 = vmatpush2.msra.mxu0 0.0
        %627 = vmatprep.subr.mxu0 0.0
        %628 = vmatpush2.msra.mxu0 0.0
        %629 = vmatprep.subr.mxu0 0.0
        %630 = vmatpush2.msra.mxu0 0.0
        %631 = vmatprep.subr.mxu0 0.0
        %632 = vmatpush2.msra.mxu0 0.0
        %633 = vmatprep.subr.mxu0 0.0
        %634 = vmatpush2.msra.mxu0 0.0
        %635 = vmatprep.subr.mxu0 0.0
        %636 = vmatpush2.msra.mxu0 0.0
        %637 = vmatprep.subr.mxu0 0.0
        %638 = vmatpush2.msra.mxu0 0.0
        %639 = vmatprep.subr.mxu0 0.0
        %640 = vmatpush2.msra.mxu0 0.0
        %641 = vmatprep.subr.mxu0 0.0
        %642 = vmatpush2.msra.mxu0 0.0
        %643 = vmatprep.mubr.f32.mxu0 0.0
        %644 = vmatmul.mubr.f32.gmra.mxu0 %v577
        %v645 = vpop.f32.mrf.mxu0
        %v646 = vadd.f32 0.0, %v645
        %v647 = vpop.f32.mrf.mxu0
        %648 = vdwg.mxu0
        %s649 = scalar_lea.vmem %s141, 16 [#allocation2]
        %650 = vst.msk [vmem:[%s649] sm:$0xff] %vm154, %v572
        %651 = vrot.lane.b32.xlu0 %v150, 104
        %v652 = vpop.permute.xlu0 %651
        %653 = vrot.lane.b32.xlu0 %v150, 72
        %v654 = vpop.permute.xlu0 %653
        %v655 = vsel %vm154, %v652, 0
        %v657 = vsel %vm154, %v654, 0
        %659 = vmatprep.subr.mxu0 0.0
        %660 = vmatpush1.xpose.msra.mxu0 0.0
        %661 = vmatprep.subr.mxu0 0.0
        %662 = vmatpush1.xpose.msra.mxu0 0.0
        %663 = vmatprep.subr.mxu0 0.0
        %664 = vmatpush1.xpose.msra.mxu0 0.0
        %665 = vmatprep.subr.mxu0 0.0
        %666 = vmatpush1.xpose.msra.mxu0 0.0
        %667 = vmatprep.subr.mxu0 0.0
        %668 = vmatpush1.xpose.msra.mxu0 0.0
        %669 = vmatprep.subr.mxu0 0.0
        %670 = vmatpush1.xpose.msra.mxu0 0.0
        %671 = vmatprep.subr.mxu0 0.0
        %672 = vmatpush1.xpose.msra.mxu0 0.0
        %673 = vmatprep.subr.mxu0 0.0
        %674 = vmatpush1.xpose.msra.mxu0 0.0
        %675 = vmatprep.subr.mxu0 0.0
        %676 = vmatpush1.xpose.msra.mxu0 0.0
        %677 = vmatprep.subr.mxu0 0.0
        %678 = vmatpush1.xpose.msra.mxu0 0.0
        %679 = vmatprep.subr.mxu0 0.0
        %680 = vmatpush1.xpose.msra.mxu0 0.0
        %681 = vmatprep.subr.mxu0 0.0
        %682 = vmatpush1.xpose.msra.mxu0 0.0
        %683 = vmatprep.subr.mxu0 0.0
        %684 = vmatpush1.xpose.msra.mxu0 0.0
        %685 = vmatprep.subr.mxu0 0.0
        %686 = vmatpush1.xpose.msra.mxu0 0.0
        %687 = vmatprep.subr.mxu0 0.0
        %688 = vmatpush1.xpose.msra.mxu0 0.0
        %689 = vmatprep.subr.mxu0 0.0
        %690 = vmatpush1.xpose.msra.mxu0 %v657
        %691 = vmatprep.subr.mxu0 0.0
        %692 = vmatpush2.xpose.msra.mxu0 0.0
        %693 = vmatprep.subr.mxu0 0.0
        %694 = vmatpush2.xpose.msra.mxu0 0.0
        %695 = vmatprep.subr.mxu0 0.0
        %696 = vmatpush2.xpose.msra.mxu0 0.0
        %697 = vmatprep.subr.mxu0 0.0
        %698 = vmatpush2.xpose.msra.mxu0 0.0
        %699 = vmatprep.subr.mxu0 0.0
        %700 = vmatpush2.xpose.msra.mxu0 0.0
        %701 = vmatprep.subr.mxu0 0.0
        %702 = vmatpush2.xpose.msra.mxu0 0.0
        %703 = vmatprep.subr.mxu0 0.0
        %704 = vmatpush2.xpose.msra.mxu0 0.0
        %705 = vmatprep.subr.mxu0 0.0
        %706 = vmatpush2.xpose.msra.mxu0 0.0
        %707 = vmatprep.subr.mxu0 0.0
        %708 = vmatpush2.xpose.msra.mxu0 0.0
        %709 = vmatprep.subr.mxu0 0.0
        %710 = vmatpush2.xpose.msra.mxu0 0.0
        %711 = vmatprep.subr.mxu0 0.0
        %712 = vmatpush2.xpose.msra.mxu0 0.0
        %713 = vmatprep.subr.mxu0 0.0
        %714 = vmatpush2.xpose.msra.mxu0 0.0
        %715 = vmatprep.subr.mxu0 0.0
        %716 = vmatpush2.xpose.msra.mxu0 0.0
        %717 = vmatprep.subr.mxu0 0.0
        %718 = vmatpush2.xpose.msra.mxu0 0.0
        %719 = vmatprep.subr.mxu0 0.0
        %720 = vmatpush2.xpose.msra.mxu0 0.0
        %721 = vmatprep.subr.mxu0 0.0
        %722 = vmatpush2.xpose.msra.mxu0 0.0
        %723 = vmatprep.mubr.f32.mxu0 0.0
        %724 = vmatmul.mubr.f32.gmra.mxu0 %v655
        %v725 = vpop.f32.mrf.mxu0
        %v726 = vadd.f32 0.0, %v725
        %v727 = vpop.f32.mrf.mxu0
        %728 = vdwg.mxu0
        %v729 = vsel %vm154, %v726, -inf
        %730 = vmax.xlane.f32.xlu0 %v729
        %v731 = vpop.xlane.xlu0 %730
        %v732 = vsub.f32 %v726, %v731
        %v733 = vmul.f32 %v732, 1.442695
        %v734 = vpow.pop %v733
        %v735 = vsel %vm154, %v734, 0.0
        %736 = vadd.xlane.f32.xlu0 %v735
        %v737 = vpop.xlane.xlu0 %736
        %v738 = vrcp.pop %v737
        %v739 = vmul.f32 %v734, %v738
        %740 = vrot.lane.b32.xlu0 %v150, 40
        %v741 = vpop.permute.xlu0 %740
        %v744 = vsel %vm154, %v739, 0
        %746 = vmatprep.subr.mxu0 0.0
        %747 = vmatpush1.msra.mxu0 0.0
        %748 = vmatprep.subr.mxu0 0.0
        %749 = vmatpush1.msra.mxu0 0.0
        %750 = vmatprep.subr.mxu0 0.0
        %751 = vmatpush1.msra.mxu0 0.0
        %752 = vmatprep.subr.mxu0 0.0
        %753 = vmatpush1.msra.mxu0 0.0
        %754 = vmatprep.subr.mxu0 0.0
        %755 = vmatpush1.msra.mxu0 0.0
        %756 = vmatprep.subr.mxu0 0.0
        %757 = vmatpush1.msra.mxu0 0.0
        %758 = vmatprep.subr.mxu0 0.0
        %759 = vmatpush1.msra.mxu0 0.0
        %760 = vmatprep.subr.mxu0 0.0
        %761 = vmatpush1.msra.mxu0 0.0
        %762 = vmatprep.subr.mxu0 0.0
        %763 = vmatpush1.msra.mxu0 0.0
        %764 = vmatprep.subr.mxu0 0.0
        %765 = vmatpush1.msra.mxu0 0.0
        %766 = vmatprep.subr.mxu0 0.0
        %767 = vmatpush1.msra.mxu0 0.0
        %768 = vmatprep.subr.mxu0 0.0
        %769 = vmatpush1.msra.mxu0 0.0
        %770 = vmatprep.subr.mxu0 0.0
        %771 = vmatpush1.msra.mxu0 0.0
        %772 = vmatprep.subr.mxu0 0.0
        %773 = vmatpush1.msra.mxu0 0.0
        %774 = vmatprep.subr.mxu0 0.0
        %775 = vmatpush1.msra.mxu0 0.0
        %776 = vmatprep.subr.mxu0 0.0
        %777 = vmatpush1.msra.mxu0 %v741
        %778 = vmatprep.subr.mxu0 0.0
        %779 = vmatpush2.msra.mxu0 0.0
        %780 = vmatprep.subr.mxu0 0.0
        %781 = vmatpush2.msra.mxu0 0.0
        %782 = vmatprep.subr.mxu0 0.0
        %783 = vmatpush2.msra.mxu0 0.0
        %784 = vmatprep.subr.mxu0 0.0
        %785 = vmatpush2.msra.mxu0 0.0
        %786 = vmatprep.subr.mxu0 0.0
        %787 = vmatpush2.msra.mxu0 0.0
        %788 = vmatprep.subr.mxu0 0.0
        %789 = vmatpush2.msra.mxu0 0.0
        %790 = vmatprep.subr.mxu0 0.0
        %791 = vmatpush2.msra.mxu0 0.0
        %792 = vmatprep.subr.mxu0 0.0
        %793 = vmatpush2.msra.mxu0 0.0
        %794 = vmatprep.subr.mxu0 0.0
        %795 = vmatpush2.msra.mxu0 0.0
        %796 = vmatprep.subr.mxu0 0.0
        %797 = vmatpush2.msra.mxu0 0.0
        %798 = vmatprep.subr.mxu0 0.0
        %799 = vmatpush2.msra.mxu0 0.0
        %800 = vmatprep.subr.mxu0 0.0
        %801 = vmatpush2.msra.mxu0 0.0
        %802 = vmatprep.subr.mxu0 0.0
        %803 = vmatpush2.msra.mxu0 0.0
        %804 = vmatprep.subr.mxu0 0.0
        %805 = vmatpush2.msra.mxu0 0.0
        %806 = vmatprep.subr.mxu0 0.0
        %807 = vmatpush2.msra.mxu0 0.0
        %808 = vmatprep.subr.mxu0 0.0
        %809 = vmatpush2.msra.mxu0 0.0
        %810 = vmatprep.mubr.f32.mxu0 0.0
        %811 = vmatmul.mubr.f32.gmra.mxu0 %v744
        %v812 = vpop.f32.mrf.mxu0
        %v813 = vadd.f32 0.0, %v812
        %v814 = vpop.f32.mrf.mxu0
        %815 = vdwg.mxu0
        %s816 = scalar_lea.vmem %s141, 24 [#allocation2]
        %817 = vst.msk [vmem:[%s816] sm:$0xff] %vm154, %v739
        %819 = vrot.lane.b32.xlu0 %v479, 8
        %v820 = vpop.permute.xlu0 %819
        %823 = vrot.lane.b32.xlu0 %v646, 16
        %v824 = vpop.permute.xlu0 %823
        %827 = vrot.lane.b32.xlu0 %v813, 24
        %v828 = vpop.permute.xlu0 %827
        %v830 = vsel %vm154, %v313, %v820
        %vm831 = vcmask 130048
        %v832 = vsel %vm831, %v830, %v824
        %vm833 = vcmask 195584
        %v834 = vsel %vm833, %v832, %v828
        %vm835 = vcmask 261120
        %836 = vst.msk [vmem:[%s149] sm:$0xff] %vm835, %v834
        %p837 = scmp.lt.s32.totalorder %s17, 1
        %s838 = scalar_select %p837, %s17, 1
        %s839 = smul.addr %s838, 8
        %s840 = scalar_lea.vmem %s1, %s839
        %s841 = sand.u32 %s77, 1
        %s842 = scalar_lea.sflag [#allocation3], %s841
        %s843 = sand.u32 %s77, 1
        %s844 = smul.addr %s843, 32
        %s845 = scalar_lea.vmem [#allocation2], %s844
        // Predicated region
        $region25: #{quant_attention_forward.4} parent=23 // pred_check
          %p846 = pneg %p61
        $region26: #{quant_attention_forward.4} parent=23 // pred_check_branch
          %848 = sbr.rel (%p846) target = $region28
        $region27: #{quant_attention_forward.4} parent=23 // pred_region
          _
        $region28: #{quant_attention_forward.4} parent=23 // pred_fallthru
          _
        // Predicated region
        $region29: #{quant_attention_forward.4} parent=23 // pred_check
          %p849 = pneg %p87
        $region30: #{quant_attention_forward.4} parent=23 // pred_check_branch
          %851 = sbr.rel (%p849) target = $region32
        $region31: #{quant_attention_forward.4} parent=23 // pred_region
          %s853 = ssub.s32 512, 512
          %854 = vsyncadd %s842, %s853
          %s855 = smul.addr %s17, 4
          %s856 = smul.addr %s855, 128
          %s857 = scalar_lea.hbm %s2, %s856
          %s858 = sshll.u32 %s845, 4
          %s859 = int_to_ptr.vmem [resolvable:$true] %s858
          %864 = dma.vmem_to_hbm [thread:$0]  %s859, 512, %s857, %s842, 128, 128, 8
        $region32: #{quant_attention_forward.4} parent=23 // pred_fallthru
          _
      $region24: #{quant_attention_forward.4} parent=5 // pred_fallthru
        _
      %p865 = scmp.le.s32.totalorder 2, %s12
      // Predicated region
      $region33: #{quant_attention_forward.4} parent=5 // pred_check
        %p866 = pneg %p865
      $region34: #{quant_attention_forward.4} parent=5 // pred_check_branch
        %868 = sbr.rel (%p866) target = $region36
      $region35: #{quant_attention_forward.4} parent=5 // pred_region
        %s869 = ssub.s32 %s12, 2
        // Predicated region
        $region37: #{quant_attention_forward.4} parent=35 // pred_check
          %p870 = pneg %p67
        $region38: #{quant_attention_forward.4} parent=35 // pred_check_branch
          %872 = sbr.rel (%p870) target = $region40
        $region39: #{quant_attention_forward.4} parent=35 // pred_region
          %p873 = scmp.lt.s32.totalorder %s18, 1
          %s874 = scalar_select %p873, %s18, 1
          %s875 = smul.addr %s874, 8
          %s876 = scalar_lea.vmem %s1, %s875
        $region40: #{quant_attention_forward.4} parent=35 // pred_fallthru
          _
        // Predicated region
        $region41: #{quant_attention_forward.4} parent=35 // pred_check
          %p877 = pneg %p93
        $region42: #{quant_attention_forward.4} parent=35 // pred_check_branch
          %879 = sbr.rel (%p877) target = $region44
        $region43: #{quant_attention_forward.4} parent=35 // pred_region
          %s880 = sand.u32 %s78, 1
          %s881 = scalar_lea.sflag [#allocation3], %s880
          %s882 = sand.u32 %s78, 1
          %s883 = smul.addr %s882, 32
          %s884 = scalar_lea.vmem [#allocation2], %s883
          %885 = dma.done %s881, 512
        $region44: #{quant_attention_forward.4} parent=35 // pred_fallthru
          _
      $region36: #{quant_attention_forward.4} parent=5 // pred_fallthru
        _
    $region6: #{quant_attention_forward.4} parent=1 // loop_footer
      %s16 = sadd.s32 1, %s12
    $region7: #{quant_attention_forward.4} parent=1 // loop_footer_branch
      %11 = sbr.rel target = $region3
    $region8: #{quant_attention_forward.4} parent=1 // loop_exit
      _
    %886 = vsyncpa [#allocation3], 1
    %s887 = scalar_lea.sflag [#allocation3], 1
    %888 = vsyncpa %s887, 1

</llo_original>
